<compile_context>
chip_gen: v5e
topology: v5e:2x2
jax: 0.10.0
libtpu: 0.0.40
codegen_flags: <defaults>
</compile_context>

<pallas_src>
import jax
import jax.numpy as jnp
from jax.experimental import pallas as pl
from jax.experimental.pallas import tpu as pltpu


# ------------------------------ small helpers ------------------------------

def _sum_stats(y):
    """(rows, C) f32 -> (2, C) [sum, sum-of-squares] partial stats for two-pass BN."""
    return jnp.concatenate(
        [jnp.sum(y, axis=0, keepdims=True),
         jnp.sum(y * y, axis=0, keepdims=True)], axis=0)


def _scale_shift(stats, gamma, beta, count, eps):
    """Fold batch stats + affine params into y*scale + shift."""
    mean = stats[0] / count
    var = jnp.maximum(stats[1] / count - mean * mean, 0.0)
    scale = gamma.reshape(-1) * jax.lax.rsqrt(var + eps)
    shift = beta.reshape(-1) - mean * scale
    return (scale.reshape(1, -1).astype(jnp.float32),
            shift.reshape(1, -1).astype(jnp.float32))


def _pick_row_tile(m, bytes_per_row, *, budget_bytes=4 << 20, max_rows=2048):
    """Largest multiple-of-16 (fallback 8) divisor of m within the per-pass byte budget."""
    cap = max(16, min(max_rows, budget_bytes // max(bytes_per_row, 1)))
    cap = min(cap, m)
    for step in (16, 8):
        best, t = 0, step
        while t <= cap:
            if m % t == 0:
                best = t
            t += step
        if best:
            return best
    return m  # pathological M with no small divisor: single block


def _vmem_limit_bytes():
    """~Half of physical VMEM: ~96 MiB on v5e/v6e (128 MiB), ~32 MiB on v7x (64 MiB)."""
    try:
        cap = getattr(pltpu.get_tpu_info(), "vmem_capacity_bytes", None)
        if cap:
            return int(min(cap // 2, 96 * 1024 * 1024))
    except Exception:
        pass
    return 32 * 1024 * 1024


# ------------------------------ pass 1: conv1 (+ fused skip conv) + partial stats ------------------------------

def _make_pass1_kernel(downsample, Cmid):
    if downsample:
        def kernel(x_ref, wcat_ref, h1_ref, sd_ref, st_ref):
            # Single GEMM against [w1 | wd]; slice the result into main / skip branches.
            y = jnp.dot(x_ref[...], wcat_ref[...], preferred_element_type=jnp.float32)
            h1_ref[...] = y[:, :Cmid].astype(h1_ref.dtype)
            sd_ref[...] = y[:, Cmid:].astype(sd_ref.dtype)
            st_ref[...] = _sum_stats(y)[None]                 # (1, 2, Cmid+Cout) partial
    else:
        def kernel(x_ref, w1_ref, h1_ref, st_ref):
            h1 = jnp.dot(x_ref[...], w1_ref[...], preferred_element_type=jnp.float32)
            h1_ref[...] = h1.astype(h1_ref.dtype)
            st_ref[...] = _sum_stats(h1)[None]                # (1, 2, Cmid) partial
    return kernel


# ------------------------------ pass 2: bn1+relu, zero-halo 3x3 conv (per-tap GEMMs) + partial stats ------------------------------

def _make_conv2_kernel(Ho, Wo, Cmid):
    HW = Ho * Wo
    taps = [(dy, dx) for dy in range(3) for dx in range(3)]

    def kernel(h1_ref, sc_ref, sh_ref, w2_ref, h2_ref, st_ref, pad_ref):
        # Re-zero the padded scratch every step (VMEM-only, ~100 vst): required because the
        # grid axis is "parallel" (megacore) so there is no "first step" per buffer.
        pad_ref[...] = jnp.zeros_like(pad_ref)

        # bn1 apply + relu (f32), laid into the padded image interior as bf16.
        a1 = jnp.maximum(h1_ref[...].astype(jnp.float32) * sc_ref[...] + sh_ref[...], 0.0)
        pad_ref[pl.ds(1, Ho), pl.ds(1, Wo), :] = a1.reshape(Ho, Wo, Cmid).astype(pad_ref.dtype)

        # 3x3 conv = 9 shifted-window GEMMs accumulated in f32 (no im2col slab materialized;
        # one tap live at a time -> minimal VMEM/vreg pressure).
        h2 = jnp.zeros((HW, Cmid), jnp.float32)
        for t, (dy, dx) in enumerate(taps):
            tap = pad_ref[pl.ds(dy, Ho), pl.ds(dx, Wo), :].reshape(HW, Cmid)
            h2 = h2 + jnp.dot(tap, w2_ref[t], preferred_element_type=jnp.float32)

        h2_ref[...] = h2.astype(h2_ref.dtype)
        st_ref[...] = _sum_stats(h2)[None]                    # (1, 2, Cmid) partial

    return kernel


# ------------------------------ pass 3: bn2+relu, conv3 GEMM + partial stats ------------------------------

def _pass3_kernel(h2_ref, sc_ref, sh_ref, w3_ref, h3_ref, st_ref):
    a2 = jnp.maximum(h2_ref[...].astype(jnp.float32) * sc_ref[...] + sh_ref[...], 0.0)
    h3 = jnp.dot(a2.astype(jnp.bfloat16), w3_ref[...], preferred_element_type=jnp.float32)
    h3_ref[...] = h3.astype(h3_ref.dtype)
    st_ref[...] = _sum_stats(h3)[None]                        # (1, 2, Cout) partial


# ------------------------------ pass 4: bn3 apply + skip + relu ------------------------------

def _make_pass4_kernel(downsample):
    if downsample:
        def kernel(h3_ref, sc3_ref, sh3_ref, sd_ref, scd_ref, shd_ref, out_ref):
            y = h3_ref[...].astype(jnp.float32) * sc3_ref[...] + sh3_ref[...]
            skip = sd_ref[...].astype(jnp.float32) * scd_ref[...] + shd_ref[...]
            out_ref[...] = jnp.maximum(y + skip, 0.0).astype(out_ref.dtype)
    else:
        def kernel(h3_ref, sc3_ref, sh3_ref, skip_ref, out_ref):
            y = h3_ref[...].astype(jnp.float32) * sc3_ref[...] + sh3_ref[...]
            out_ref[...] = jnp.maximum(y + skip_ref[...].astype(jnp.float32), 0.0).astype(out_ref.dtype)
    return kernel


# ------------------------------ wrapper ------------------------------

def bottleneck_forward(x_nchw, p, *, downsample, eps=1e-5, max_row_tile=2048,
                       out_dtype=jnp.float32):
    x = jnp.transpose(x_nchw, (0, 2, 3, 1)).astype(jnp.float32)          # NCHW -> NHWC
    xs = x[:, ::2, ::2, :] if downsample else x                          # stride-2 1x1 == subsample
    N, Ho, Wo, Cin = xs.shape
    Cmid = p['w1'].shape[1]
    Cout = p['w3'].shape[1]
    if not downsample:
        assert Cin == Cout, "identity skip requires Cin == Cout"
    M = N * Ho * Wo
    HW = Ho * Wo

    xs2 = xs.reshape(M, Cin).astype(jnp.bfloat16)                        # bf16 GEMM input / skip
    # Conv biases (bd/b1/b2/b3) are deliberately NOT used: training-mode BN right after
    # each conv cancels a per-channel constant bias exactly.
    w1 = p['w1'].astype(jnp.bfloat16)
    w3 = p['w3'].astype(jnp.bfloat16)
    w2 = p['w2'].reshape(9, Cmid, Cmid).astype(jnp.bfloat16)             # tap-major [dy*3+dx]

    vmem_limit = _vmem_limit_bytes()
    params_par = pltpu.CompilerParams(dimension_semantics=("parallel",),
                                      vmem_limit_bytes=vmem_limit)

    row_spec = lambda t, c: pl.BlockSpec((t, c), lambda i: (i, 0))       # pipelined row tiles
    full_spec = lambda a: pl.BlockSpec(a.shape, lambda i: (0,) * a.ndim) # resident (loaded once)
    pstat_spec = lambda c: pl.BlockSpec((1, 2, c), lambda i: (i, 0, 0))  # per-step partial stats

    # ---- pass 1: conv1 (+ fused downsample-skip conv) ----
    bpr1 = 2 * (Cin + Cmid + (Cout if downsample else 0))
    tm1 = _pick_row_tile(M, bpr1, max_rows=max_row_tile)
    g1 = M // tm1
    if downsample:
        wcat = jnp.concatenate([w1, p['wd'].astype(jnp.bfloat16)], axis=1)   # (Cin, Cmid+Cout)
        h1, sd, st1 = pl.pallas_call(
            _make_pass1_kernel(True, Cmid),
            grid=(g1,),
            in_specs=[row_spec(tm1, Cin), full_spec(wcat)],
            out_specs=[row_spec(tm1, Cmid), row_spec(tm1, Cout), pstat_spec(Cmid + Cout)],
            out_shape=[jax.ShapeDtypeStruct((M, Cmid), jnp.bfloat16),
                       jax.ShapeDtypeStruct((M, Cout), jnp.bfloat16),
                       jax.ShapeDtypeStruct((g1, 2, Cmid + Cout), jnp.float32)],
            compiler_params=params_par,
        )(xs2, wcat)
        scat = jnp.sum(st1, axis=0)
        s1, sds = scat[:, :Cmid], scat[:, Cmid:]
    else:
        h1, st1 = pl.pallas_call(
            _make_pass1_kernel(False, Cmid),
            grid=(g1,),
            in_specs=[row_spec(tm1, Cin), full_spec(w1)],
            out_specs=[row_spec(tm1, Cmid), pstat_spec(Cmid)],
            out_shape=[jax.ShapeDtypeStruct((M, Cmid), jnp.bfloat16),
                       jax.ShapeDtypeStruct((g1, 2, Cmid), jnp.float32)],
            compiler_params=params_par,
        )(xs2, w1)
        s1 = jnp.sum(st1, axis=0)
        sd = sds = None

    sc1, sh1 = _scale_shift(s1, p['g1'], p['be1'], M, eps)

    # ---- pass 2: bn1+relu -> 3x3 conv (grid over images, per-image zero-halo scratch) ----
    img_spec = pl.BlockSpec((HW, Cmid), lambda n: (n, 0))
    h2, st2 = pl.pallas_call(
        _make_conv2_kernel(Ho, Wo, Cmid),
        grid=(N,),
        in_specs=[img_spec, full_spec(sc1), full_spec(sh1), full_spec(w2)],
        out_specs=[img_spec, pstat_spec(Cmid)],
        out_shape=[jax.ShapeDtypeStruct((M, Cmid), jnp.bfloat16),
                   jax.ShapeDtypeStruct((N, 2, Cmid), jnp.float32)],
        scratch_shapes=[pltpu.VMEM((Ho + 2, Wo + 2, Cmid), jnp.bfloat16)],
        compiler_params=params_par,
    )(h1, sc1, sh1, w2)
    # TODO(synk): for very large spatial*Cmid stages on v7x (64 MiB VMEM), band each image
    # over rows with a 1-row halo instead of one full image per grid step.

    sc2, sh2 = _scale_shift(jnp.sum(st2, axis=0), p['g2'], p['be2'], M, eps)

    # ---- pass 3: bn2+relu -> conv3 ----
    bpr3 = 2 * (Cmid + Cout)
    tm3 = _pick_row_tile(M, bpr3, max_rows=max_row_tile)
    g3 = M // tm3
    h3, st3 = pl.pallas_call(
        _pass3_kernel,
        grid=(g3,),
        in_specs=[row_spec(tm3, Cmid), full_spec(sc2), full_spec(sh2), full_spec(w3)],
        out_specs=[row_spec(tm3, Cout), pstat_spec(Cout)],
        out_shape=[jax.ShapeDtypeStruct((M, Cout), jnp.bfloat16),
                   jax.ShapeDtypeStruct((g3, 2, Cout), jnp.float32)],
        compiler_params=params_par,
    )(h2, sc2, sh2, w3)

    sc3, sh3 = _scale_shift(jnp.sum(st3, axis=0), p['g3'], p['be3'], M, eps)

    # ---- pass 4: bn3 apply + skip (bf16) + relu ----
    out_bytes = jnp.dtype(out_dtype).itemsize
    bpr4 = Cout * (2 + 2 + out_bytes)
    tm4 = _pick_row_tile(M, bpr4, max_rows=max_row_tile)
    g4 = M // tm4
    if downsample:
        scd, shd = _scale_shift(sds, p['gd'], p['bed'], M, eps)
        out2 = pl.pallas_call(
            _make_pass4_kernel(True),
            grid=(g4,),
            in_specs=[row_spec(tm4, Cout), full_spec(sc3), full_spec(sh3),
                      row_spec(tm4, Cout), full_spec(scd), full_spec(shd)],
            out_specs=row_spec(tm4, Cout),
            out_shape=jax.ShapeDtypeStruct((M, Cout), out_dtype),
            compiler_params=params_par,
        )(h3, sc3, sh3, sd, scd, shd)
    else:
        out2 = pl.pallas_call(
            _make_pass4_kernel(False),
            grid=(g4,),
            in_specs=[row_spec(tm4, Cout), full_spec(sc3), full_spec(sh3),
                      row_spec(tm4, Cout)],
            out_specs=row_spec(tm4, Cout),
            out_shape=jax.ShapeDtypeStruct((M, Cout), out_dtype),
            compiler_params=params_par,
        )(h3, sc3, sh3, xs2)                                             # bf16 identity skip

    out = out2.reshape(N, Ho, Wo, Cout)
    return jnp.transpose(out, (0, 3, 1, 2))                              # NHWC -> NCHW


# ------------------------------ pure-JAX reference (f32, includes conv biases) ------------------------------

def reference_forward(x_nchw, p, *, downsample, eps=1e-5):
    x = jnp.transpose(x_nchw, (0, 2, 3, 1)).astype(jnp.float32)

    def conv(inp, w, b, stride, pad):
        y = jax.lax.conv_general_dilated(
            inp, w, window_strides=(stride, stride), padding=pad,
            dimension_numbers=('NHWC', 'HWIO', 'NHWC'),
            precision=jax.lax.Precision.HIGHEST)
        return y + b.reshape(1, 1, 1, -1)

    def bn(y, gamma, beta):
        mean = jnp.mean(y, axis=(0, 1, 2), keepdims=True)
        var = jnp.mean(jnp.square(y - mean), axis=(0, 1, 2), keepdims=True)
        return (gamma.reshape(1, 1, 1, -1) * (y - mean) / jnp.sqrt(var + eps)
                + beta.reshape(1, 1, 1, -1))

    stride = 2 if downsample else 1
    if downsample:
        skip = bn(conv(x, p['wd'].reshape(1, 1, *p['wd'].shape), p['bd'][0], 2, 'VALID'),
                  p['gd'][0], p['bed'][0])
    else:
        skip = x
    out = jax.nn.relu(bn(conv(x, p['w1'].reshape(1, 1, *p['w1'].shape), p['b1'][0],
                              stride, 'VALID'), p['g1'][0], p['be1'][0]))
    out = jax.nn.relu(bn(conv(out, p['w2'], p['b2'][0], 1, ((1, 1), (1, 1))),
                         p['g2'][0], p['be2'][0]))
    out = bn(conv(out, p['w3'].reshape(1, 1, *p['w3'].shape), p['b3'][0], 1, 'VALID'),
             p['g3'][0], p['be3'][0])
    out = jax.nn.relu(out + skip)
    return jnp.transpose(out, (0, 3, 1, 2))


# ------------------------------ self-check ------------------------------

def make_params(key, Cin, Cout, downsample):
    Cmid = Cout // 4
    ks = jax.random.split(key, 16)

    def nrm(k, shape, scale=1.0):
        return (scale * jax.random.normal(k, shape)).astype(jnp.float32)

    p = {
        'w1': nrm(ks[0], (Cin, Cmid), Cin ** -0.5),
        'b1': nrm(ks[1], (1, Cmid), 0.1),
        'g1': 1.0 + nrm(ks[2], (1, Cmid), 0.1),
        'be1': nrm(ks[3], (1, Cmid), 0.1),
        'w2': nrm(ks[4], (3, 3, Cmid, Cmid), (9 * Cmid) ** -0.5),
        'b2': nrm(ks[5], (1, Cmid), 0.1),
        'g2': 1.0 + nrm(ks[6], (1, Cmid), 0.1),
        'be2': nrm(ks[7], (1, Cmid), 0.1),
        'w3': nrm(ks[8], (Cmid, Cout), Cmid ** -0.5),
        'b3': nrm(ks[9], (1, Cout), 0.1),
        'g3': 1.0 + nrm(ks[10], (1, Cout), 0.1),
        'be3': nrm(ks[11], (1, Cout), 0.1),
    }
    if downsample:
        p.update({
            'wd': nrm(ks[12], (Cin, Cout), Cin ** -0.5),
            'bd': nrm(ks[13], (1, Cout), 0.1),
            'gd': 1.0 + nrm(ks[14], (1, Cout), 0.1),
            'bed': nrm(ks[15], (1, Cout), 0.1),
        })
    return p


if __name__ == "__main__":
    key = jax.random.PRNGKey(0)
    k1, k2, k3, k4 = jax.random.split(key, 4)

    fwd_ds = jax.jit(lambda x, p: bottleneck_forward(x, p, downsample=True))
    fwd_id = jax.jit(lambda x, p: bottleneck_forward(x, p, downsample=False))

    # Case 1: downsample bottleneck, 16 -> 32 channels, 16x16 -> 8x8 spatial.
    x1 = jax.random.normal(k1, (2, 16, 16, 16), jnp.float32)             # NCHW
    p1 = make_params(k2, 16, 32, True)
    out1 = jax.block_until_ready(fwd_ds(x1, p1))
    ref1 = reference_forward(x1, p1, downsample=True)
    err1 = float(jnp.max(jnp.abs(out1 - ref1)))

    # Case 2: identity-skip bottleneck, 32 -> 32 channels, 8x8 spatial.
    x2 = jax.random.normal(k3, (2, 32, 8, 8), jnp.float32)               # NCHW
    p2 = make_params(k4, 32, 32, False)
    out2 = jax.block_until_ready(fwd_id(x2, p2))
    ref2 = reference_forward(x2, p2, downsample=False)
    err2 = float(jnp.max(jnp.abs(out2 - ref2)))

    # bf16 MXU inputs + bf16 inter-pass activations/skip vs a full-f32 HIGHEST-precision ref.
    tol = 8e-2
    if (out1.shape == ref1.shape and out2.shape == ref2.shape
            and err1 < tol and err2 < tol):
        print("KERNEL_OK")
    else:
        raise SystemExit(
            f"mismatch: shapes {out1.shape}/{ref1.shape}, max errs {err1:.4f} {err2:.4f}")
</pallas_src>

<mosaic_0001>
module attributes {stable_mosaic.version = 11 : i64} {
  func.func @kernel(%arg0: i32, %arg1: memref<128x16xbf16, #tpu.memory_space<vmem>>, %arg2: memref<16x40xbf16, #tpu.memory_space<vmem>>, %arg3: memref<128x8xbf16, #tpu.memory_space<vmem>>, %arg4: memref<128x32xbf16, #tpu.memory_space<vmem>>, %arg5: memref<1x2x40xf32, #tpu.memory_space<vmem>>) attributes {dimension_semantics = [#tpu.dimension_semantics<parallel>], iteration_bounds = array<i64: 1>, scalar_prefetch = 0 : i64, scratch_operands = 0 : i64, tpu.core_type = #tpu.core_type<tc>, window_params = [{transform_indices = @transform_0, window_bounds = array<i64: 128, 16>}, {pipeline_mode = #tpu.pipeline_mode<synchronous>, transform_indices = @transform_1, window_bounds = array<i64: 16, 40>}, {transform_indices = @transform_2, window_bounds = array<i64: 128, 8>}, {transform_indices = @transform_3, window_bounds = array<i64: 128, 32>}, {transform_indices = @transform_4, window_bounds = array<i64: 1, 2, 40>}]} {
    %c0 = arith.constant 0 : index
    %c0_0 = arith.constant 0 : index
    %0 = vector.load %arg1[%c0, %c0_0] : memref<128x16xbf16, #tpu.memory_space<vmem>>, vector<128x16xbf16>
    %c0_1 = arith.constant 0 : index
    %c0_2 = arith.constant 0 : index
    %1 = vector.load %arg2[%c0_1, %c0_2] : memref<16x40xbf16, #tpu.memory_space<vmem>>, vector<16x40xbf16>
    %cst = arith.constant dense<0.000000e+00> : vector<128x40xf32>
    %2 = tpu.matmul %0, %1, %cst {dimension_numbers = #tpu.dot_dimension_numbers<[1], [0], [0], [1], [0, 0, 1, 1], [], []>} : vector<128x16xbf16>, vector<16x40xbf16>, vector<128x40xf32> -> vector<128x40xf32>
    %3 = vector.extract_strided_slice %2 {offsets = [0, 0], sizes = [128, 8], strides = [1, 1]} : vector<128x40xf32> to vector<128x8xf32>
    %4 = arith.truncf %3 : vector<128x8xf32> to vector<128x8xbf16>
    %c0_3 = arith.constant 0 : index
    %c0_4 = arith.constant 0 : index
    %5 = vector.load %arg3[%c0_3, %c0_4] : memref<128x8xbf16, #tpu.memory_space<vmem>>, vector<128x8xbf16>
    tpu.vector_store %arg3[%c0_3, %c0_4], %4 {strides = array<i32>} : memref<128x8xbf16, #tpu.memory_space<vmem>>, vector<128x8xbf16>,
    %6 = vector.extract_strided_slice %2 {offsets = [0, 8], sizes = [128, 32], strides = [1, 1]} : vector<128x40xf32> to vector<128x32xf32>
    %7 = arith.truncf %6 : vector<128x32xf32> to vector<128x32xbf16>
    %c0_5 = arith.constant 0 : index
    %c0_6 = arith.constant 0 : index
    %8 = vector.load %arg4[%c0_5, %c0_6] : memref<128x32xbf16, #tpu.memory_space<vmem>>, vector<128x32xbf16>
    tpu.vector_store %arg4[%c0_5, %c0_6], %7 {strides = array<i32>} : memref<128x32xbf16, #tpu.memory_space<vmem>>, vector<128x32xbf16>,
    %cst_7 = arith.constant dense<0.000000e+00> : vector<40xf32>
    %9 = vector.multi_reduction <add>, %2, %cst_7 [0] : vector<128x40xf32> to vector<40xf32>
    %10 = vector.shape_cast %9 : vector<40xf32> to vector<1x40xf32>
    %11 = arith.mulf %2, %2 : vector<128x40xf32>
    %cst_8 = arith.constant dense<0.000000e+00> : vector<40xf32>
    %12 = vector.multi_reduction <add>, %11, %cst_8 [0] : vector<128x40xf32> to vector<40xf32>
    %13 = vector.shape_cast %12 : vector<40xf32> to vector<1x40xf32>
    %14 = tpu.concatenate %10, %13 in 0 : vector<1x40xf32>, vector<1x40xf32> -> vector<2x40xf32>
    %15 = vector.shape_cast %14 : vector<2x40xf32> to vector<1x2x40xf32>
    %c0_9 = arith.constant 0 : index
    %c0_10 = arith.constant 0 : index
    %c0_11 = arith.constant 0 : index
    %16 = vector.load %arg5[%c0_9, %c0_10, %c0_11] : memref<1x2x40xf32, #tpu.memory_space<vmem>>, vector<1x2x40xf32>
    tpu.vector_store %arg5[%c0_9, %c0_10, %c0_11], %15 {strides = array<i32>} : memref<1x2x40xf32, #tpu.memory_space<vmem>>, vector<1x2x40xf32>,
    return
  }
  func.func @transform_0(%arg0: i32) -> (i32, i32) {
    %c0_i32 = arith.constant 0 : i32
    %c0_i32_0 = arith.constant 0 : i32
    return %arg0, %c0_i32 : i32, i32
  }
  func.func @transform_1(%arg0: i32) -> (i32, i32) {
    %c0_i32 = arith.constant 0 : i32
    %c0_i32_0 = arith.constant 0 : i32
    %c0_i32_1 = arith.constant 0 : i32
    return %c0_i32, %c0_i32_0 : i32, i32
  }
  func.func @transform_2(%arg0: i32) -> (i32, i32) {
    %c0_i32 = arith.constant 0 : i32
    %c0_i32_0 = arith.constant 0 : i32
    return %arg0, %c0_i32 : i32, i32
  }
  func.func @transform_3(%arg0: i32) -> (i32, i32) {
    %c0_i32 = arith.constant 0 : i32
    %c0_i32_0 = arith.constant 0 : i32
    return %arg0, %c0_i32 : i32, i32
  }
  func.func @transform_4(%arg0: i32) -> (i32, i32, i32) {
    %c0_i32 = arith.constant 0 : i32
    %c0_i32_0 = arith.constant 0 : i32
    %c0_i32_1 = arith.constant 0 : i32
    return %arg0, %c0_i32, %c0_i32_0 : i32, i32, i32
  }
}

module attributes {stable_mosaic.version = 11 : i64} {
  func.func @kernel(%arg0: i32, %arg1: memref<64x8xbf16, #tpu.memory_space<vmem>>, %arg2: memref<1x8xf32, #tpu.memory_space<vmem>>, %arg3: memref<1x8xf32, #tpu.memory_space<vmem>>, %arg4: memref<9x8x8xbf16, #tpu.memory_space<vmem>>, %arg5: memref<64x8xbf16, #tpu.memory_space<vmem>>, %arg6: memref<1x2x8xf32, #tpu.memory_space<vmem>>, %arg7: memref<10x10x8xbf16, #tpu.memory_space<vmem>>) attributes {dimension_semantics = [#tpu.dimension_semantics<parallel>], iteration_bounds = array<i64: 2>, scalar_prefetch = 0 : i64, scratch_operands = 1 : i64, tpu.core_type = #tpu.core_type<tc>, window_params = [{transform_indices = @transform_0, window_bounds = array<i64: 64, 8>}, {pipeline_mode = #tpu.pipeline_mode<synchronous>, transform_indices = @transform_1, window_bounds = array<i64: 1, 8>}, {pipeline_mode = #tpu.pipeline_mode<synchronous>, transform_indices = @transform_2, window_bounds = array<i64: 1, 8>}, {pipeline_mode = #tpu.pipeline_mode<synchronous>, transform_indices = @transform_3, window_bounds = array<i64: 9, 8, 8>}, {transform_indices = @transform_4, window_bounds = array<i64: 64, 8>}, {transform_indices = @transform_5, window_bounds = array<i64: 1, 2, 8>}]} {
    %cst = arith.constant 0.000000e+00 : bf16
    %0 = vector.broadcast %cst : bf16 to vector<10x10x8xbf16>
    %c0 = arith.constant 0 : index
    %c0_0 = arith.constant 0 : index
    %c0_1 = arith.constant 0 : index
    %1 = vector.load %arg7[%c0, %c0_0, %c0_1] : memref<10x10x8xbf16, #tpu.memory_space<vmem>>, vector<10x10x8xbf16>
    tpu.vector_store %arg7[%c0, %c0_0, %c0_1], %0 {strides = array<i32>} : memref<10x10x8xbf16, #tpu.memory_space<vmem>>, vector<10x10x8xbf16>,
    %c0_2 = arith.constant 0 : index
    %c0_3 = arith.constant 0 : index
    %2 = vector.load %arg1[%c0_2, %c0_3] : memref<64x8xbf16, #tpu.memory_space<vmem>>, vector<64x8xbf16>
    %3 = arith.extf %2 : vector<64x8xbf16> to vector<64x8xf32>
    %c0_4 = arith.constant 0 : index
    %c0_5 = arith.constant 0 : index
    %4 = vector.load %arg2[%c0_4, %c0_5] : memref<1x8xf32, #tpu.memory_space<vmem>>, vector<1x8xf32>
    %5 = vector.broadcast %4 : vector<1x8xf32> to vector<64x8xf32>
    %6 = arith.mulf %3, %5 : vector<64x8xf32>
    %c0_6 = arith.constant 0 : index
    %c0_7 = arith.constant 0 : index
    %7 = vector.load %arg3[%c0_6, %c0_7] : memref<1x8xf32, #tpu.memory_space<vmem>>, vector<1x8xf32>
    %8 = vector.broadcast %7 : vector<1x8xf32> to vector<64x8xf32>
    %9 = arith.addf %6, %8 : vector<64x8xf32>
    %cst_8 = arith.constant 0.000000e+00 : f32
    %10 = vector.broadcast %cst_8 : f32 to vector<64x8xf32>
    %11 = arith.maximumf %9, %10 : vector<64x8xf32>
    %12 = vector.shape_cast %11 : vector<64x8xf32> to vector<8x8x8xf32>
    %13 = arith.truncf %12 : vector<8x8x8xf32> to vector<8x8x8xbf16>
    %c1 = arith.constant 1 : index
    %c1_9 = arith.constant 1 : index
    %c0_10 = arith.constant 0 : index
    %14 = vector.load %arg7[%c1, %c1_9, %c0_10] : memref<10x10x8xbf16, #tpu.memory_space<vmem>>, vector<8x8x8xbf16>
    tpu.vector_store %arg7[%c1, %c1_9, %c0_10], %13 {strides = array<i32>} : memref<10x10x8xbf16, #tpu.memory_space<vmem>>, vector<8x8x8xbf16>,
    %cst_11 = arith.constant 0.000000e+00 : f32
    %15 = vector.broadcast %cst_11 : f32 to vector<64x8xf32>
    %c0_12 = arith.constant 0 : index
    %c0_13 = arith.constant 0 : index
    %c0_14 = arith.constant 0 : index
    %16 = vector.load %arg7[%c0_12, %c0_13, %c0_14] : memref<10x10x8xbf16, #tpu.memory_space<vmem>>, vector<8x8x8xbf16>
    %17 = vector.shape_cast %16 : vector<8x8x8xbf16> to vector<64x8xbf16>
    %c0_15 = arith.constant 0 : index
    %c0_16 = arith.constant 0 : index
    %c0_17 = arith.constant 0 : index
    %18 = vector.load %arg4[%c0_15, %c0_16, %c0_17] : memref<9x8x8xbf16, #tpu.memory_space<vmem>>, vector<1x8x8xbf16>
    %19 = vector.shape_cast %18 : vector<1x8x8xbf16> to vector<8x8xbf16>
    %cst_18 = arith.constant dense<0.000000e+00> : vector<64x8xf32>
    %20 = tpu.matmul %17, %19, %cst_18 {dimension_numbers = #tpu.dot_dimension_numbers<[1], [0], [0], [1], [0, 0, 1, 1], [], []>} : vector<64x8xbf16>, vector<8x8xbf16>, vector<64x8xf32> -> vector<64x8xf32>
    %21 = arith.addf %15, %20 : vector<64x8xf32>
    %c0_19 = arith.constant 0 : index
    %c1_20 = arith.constant 1 : index
    %c0_21 = arith.constant 0 : index
    %22 = vector.load %arg7[%c0_19, %c1_20, %c0_21] : memref<10x10x8xbf16, #tpu.memory_space<vmem>>, vector<8x8x8xbf16>
    %23 = vector.shape_cast %22 : vector<8x8x8xbf16> to vector<64x8xbf16>
    %c1_22 = arith.constant 1 : index
    %c0_23 = arith.constant 0 : index
    %c0_24 = arith.constant 0 : index
    %24 = vector.load %arg4[%c1_22, %c0_23, %c0_24] : memref<9x8x8xbf16, #tpu.memory_space<vmem>>, vector<1x8x8xbf16>
    %25 = vector.shape_cast %24 : vector<1x8x8xbf16> to vector<8x8xbf16>
    %cst_25 = arith.constant dense<0.000000e+00> : vector<64x8xf32>
    %26 = tpu.matmul %23, %25, %cst_25 {dimension_numbers = #tpu.dot_dimension_numbers<[1], [0], [0], [1], [0, 0, 1, 1], [], []>} : vector<64x8xbf16>, vector<8x8xbf16>, vector<64x8xf32> -> vector<64x8xf32>
    %27 = arith.addf %21, %26 : vector<64x8xf32>
    %c0_26 = arith.constant 0 : index
    %c2 = arith.constant 2 : index
    %c0_27 = arith.constant 0 : index
    %28 = vector.load %arg7[%c0_26, %c2, %c0_27] : memref<10x10x8xbf16, #tpu.memory_space<vmem>>, vector<8x8x8xbf16>
    %29 = vector.shape_cast %28 : vector<8x8x8xbf16> to vector<64x8xbf16>
    %c2_28 = arith.constant 2 : index
    %c0_29 = arith.constant 0 : index
    %c0_30 = arith.constant 0 : index
    %30 = vector.load %arg4[%c2_28, %c0_29, %c0_30] : memref<9x8x8xbf16, #tpu.memory_space<vmem>>, vector<1x8x8xbf16>
    %31 = vector.shape_cast %30 : vector<1x8x8xbf16> to vector<8x8xbf16>
    %cst_31 = arith.constant dense<0.000000e+00> : vector<64x8xf32>
    %32 = tpu.matmul %29, %31, %cst_31 {dimension_numbers = #tpu.dot_dimension_numbers<[1], [0], [0], [1], [0, 0, 1, 1], [], []>} : vector<64x8xbf16>, vector<8x8xbf16>, vector<64x8xf32> -> vector<64x8xf32>
    %33 = arith.addf %27, %32 : vector<64x8xf32>
    %c1_32 = arith.constant 1 : index
    %c0_33 = arith.constant 0 : index
    %c0_34 = arith.constant 0 : index
    %34 = vector.load %arg7[%c1_32, %c0_33, %c0_34] : memref<10x10x8xbf16, #tpu.memory_space<vmem>>, vector<8x8x8xbf16>
    %35 = vector.shape_cast %34 : vector<8x8x8xbf16> to vector<64x8xbf16>
    %c3 = arith.constant 3 : index
    %c0_35 = arith.constant 0 : index
    %c0_36 = arith.constant 0 : index
    %36 = vector.load %arg4[%c3, %c0_35, %c0_36] : memref<9x8x8xbf16, #tpu.memory_space<vmem>>, vector<1x8x8xbf16>
    %37 = vector.shape_cast %36 : vector<1x8x8xbf16> to vector<8x8xbf16>
    %cst_37 = arith.constant dense<0.000000e+00> : vector<64x8xf32>
    %38 = tpu.matmul %35, %37, %cst_37 {dimension_numbers = #tpu.dot_dimension_numbers<[1], [0], [0], [1], [0, 0, 1, 1], [], []>} : vector<64x8xbf16>, vector<8x8xbf16>, vector<64x8xf32> -> vector<64x8xf32>
    %39 = arith.addf %33, %38 : vector<64x8xf32>
    %c1_38 = arith.constant 1 : index
    %c1_39 = arith.constant 1 : index
    %c0_40 = arith.constant 0 : index
    %40 = vector.load %arg7[%c1_38, %c1_39, %c0_40] : memref<10x10x8xbf16, #tpu.memory_space<vmem>>, vector<8x8x8xbf16>
    %41 = vector.shape_cast %40 : vector<8x8x8xbf16> to vector<64x8xbf16>
    %c4 = arith.constant 4 : index
    %c0_41 = arith.constant 0 : index
    %c0_42 = arith.constant 0 : index
    %42 = vector.load %arg4[%c4, %c0_41, %c0_42] : memref<9x8x8xbf16, #tpu.memory_space<vmem>>, vector<1x8x8xbf16>
    %43 = vector.shape_cast %42 : vector<1x8x8xbf16> to vector<8x8xbf16>
    %cst_43 = arith.constant dense<0.000000e+00> : vector<64x8xf32>
    %44 = tpu.matmul %41, %43, %cst_43 {dimension_numbers = #tpu.dot_dimension_numbers<[1], [0], [0], [1], [0, 0, 1, 1], [], []>} : vector<64x8xbf16>, vector<8x8xbf16>, vector<64x8xf32> -> vector<64x8xf32>
    %45 = arith.addf %39, %44 : vector<64x8xf32>
    %c1_44 = arith.constant 1 : index
    %c2_45 = arith.constant 2 : index
    %c0_46 = arith.constant 0 : index
    %46 = vector.load %arg7[%c1_44, %c2_45, %c0_46] : memref<10x10x8xbf16, #tpu.memory_space<vmem>>, vector<8x8x8xbf16>
    %47 = vector.shape_cast %46 : vector<8x8x8xbf16> to vector<64x8xbf16>
    %c5 = arith.constant 5 : index
    %c0_47 = arith.constant 0 : index
    %c0_48 = arith.constant 0 : index
    %48 = vector.load %arg4[%c5, %c0_47, %c0_48] : memref<9x8x8xbf16, #tpu.memory_space<vmem>>, vector<1x8x8xbf16>
    %49 = vector.shape_cast %48 : vector<1x8x8xbf16> to vector<8x8xbf16>
    %cst_49 = arith.constant dense<0.000000e+00> : vector<64x8xf32>
    %50 = tpu.matmul %47, %49, %cst_49 {dimension_numbers = #tpu.dot_dimension_numbers<[1], [0], [0], [1], [0, 0, 1, 1], [], []>} : vector<64x8xbf16>, vector<8x8xbf16>, vector<64x8xf32> -> vector<64x8xf32>
    %51 = arith.addf %45, %50 : vector<64x8xf32>
    %c2_50 = arith.constant 2 : index
    %c0_51 = arith.constant 0 : index
    %c0_52 = arith.constant 0 : index
    %52 = vector.load %arg7[%c2_50, %c0_51, %c0_52] : memref<10x10x8xbf16, #tpu.memory_space<vmem>>, vector<8x8x8xbf16>
    %53 = vector.shape_cast %52 : vector<8x8x8xbf16> to vector<64x8xbf16>
    %c6 = arith.constant 6 : index
    %c0_53 = arith.constant 0 : index
    %c0_54 = arith.constant 0 : index
    %54 = vector.load %arg4[%c6, %c0_53, %c0_54] : memref<9x8x8xbf16, #tpu.memory_space<vmem>>, vector<1x8x8xbf16>
    %55 = vector.shape_cast %54 : vector<1x8x8xbf16> to vector<8x8xbf16>
    %cst_55 = arith.constant dense<0.000000e+00> : vector<64x8xf32>
    %56 = tpu.matmul %53, %55, %cst_55 {dimension_numbers = #tpu.dot_dimension_numbers<[1], [0], [0], [1], [0, 0, 1, 1], [], []>} : vector<64x8xbf16>, vector<8x8xbf16>, vector<64x8xf32> -> vector<64x8xf32>
    %57 = arith.addf %51, %56 : vector<64x8xf32>
    %c2_56 = arith.constant 2 : index
    %c1_57 = arith.constant 1 : index
    %c0_58 = arith.constant 0 : index
    %58 = vector.load %arg7[%c2_56, %c1_57, %c0_58] : memref<10x10x8xbf16, #tpu.memory_space<vmem>>, vector<8x8x8xbf16>
    %59 = vector.shape_cast %58 : vector<8x8x8xbf16> to vector<64x8xbf16>
    %c7 = arith.constant 7 : index
    %c0_59 = arith.constant 0 : index
    %c0_60 = arith.constant 0 : index
    %60 = vector.load %arg4[%c7, %c0_59, %c0_60] : memref<9x8x8xbf16, #tpu.memory_space<vmem>>, vector<1x8x8xbf16>
    %61 = vector.shape_cast %60 : vector<1x8x8xbf16> to vector<8x8xbf16>
    %cst_61 = arith.constant dense<0.000000e+00> : vector<64x8xf32>
    %62 = tpu.matmul %59, %61, %cst_61 {dimension_numbers = #tpu.dot_dimension_numbers<[1], [0], [0], [1], [0, 0, 1, 1], [], []>} : vector<64x8xbf16>, vector<8x8xbf16>, vector<64x8xf32> -> vector<64x8xf32>
    %63 = arith.addf %57, %62 : vector<64x8xf32>
    %c2_62 = arith.constant 2 : index
    %c2_63 = arith.constant 2 : index
    %c0_64 = arith.constant 0 : index
    %64 = vector.load %arg7[%c2_62, %c2_63, %c0_64] : memref<10x10x8xbf16, #tpu.memory_space<vmem>>, vector<8x8x8xbf16>
    %65 = vector.shape_cast %64 : vector<8x8x8xbf16> to vector<64x8xbf16>
    %c8 = arith.constant 8 : index
    %c0_65 = arith.constant 0 : index
    %c0_66 = arith.constant 0 : index
    %66 = vector.load %arg4[%c8, %c0_65, %c0_66] : memref<9x8x8xbf16, #tpu.memory_space<vmem>>, vector<1x8x8xbf16>
    %67 = vector.shape_cast %66 : vector<1x8x8xbf16> to vector<8x8xbf16>
    %cst_67 = arith.constant dense<0.000000e+00> : vector<64x8xf32>
    %68 = tpu.matmul %65, %67, %cst_67 {dimension_numbers = #tpu.dot_dimension_numbers<[1], [0], [0], [1], [0, 0, 1, 1], [], []>} : vector<64x8xbf16>, vector<8x8xbf16>, vector<64x8xf32> -> vector<64x8xf32>
    %69 = arith.addf %63, %68 : vector<64x8xf32>
    %70 = arith.truncf %69 : vector<64x8xf32> to vector<64x8xbf16>
    %c0_68 = arith.constant 0 : index
    %c0_69 = arith.constant 0 : index
    %71 = vector.load %arg5[%c0_68, %c0_69] : memref<64x8xbf16, #tpu.memory_space<vmem>>, vector<64x8xbf16>
    tpu.vector_store %arg5[%c0_68, %c0_69], %70 {strides = array<i32>} : memref<64x8xbf16, #tpu.memory_space<vmem>>, vector<64x8xbf16>,
    %cst_70 = arith.constant dense<0.000000e+00> : vector<8xf32>
    %72 = vector.multi_reduction <add>, %69, %cst_70 [0] : vector<64x8xf32> to vector<8xf32>
    %73 = vector.shape_cast %72 : vector<8xf32> to vector<1x8xf32>
    %74 = arith.mulf %69, %69 : vector<64x8xf32>
    %cst_71 = arith.constant dense<0.000000e+00> : vector<8xf32>
    %75 = vector.multi_reduction <add>, %74, %cst_71 [0] : vector<64x8xf32> to vector<8xf32>
    %76 = vector.shape_cast %75 : vector<8xf32> to vector<1x8xf32>
    %77 = tpu.concatenate %73, %76 in 0 : vector<1x8xf32>, vector<1x8xf32> -> vector<2x8xf32>
    %78 = vector.shape_cast %77 : vector<2x8xf32> to vector<1x2x8xf32>
    %c0_72 = arith.constant 0 : index
    %c0_73 = arith.constant 0 : index
    %c0_74 = arith.constant 0 : index
    %79 = vector.load %arg6[%c0_72, %c0_73, %c0_74] : memref<1x2x8xf32, #tpu.memory_space<vmem>>, vector<1x2x8xf32>
    tpu.vector_store %arg6[%c0_72, %c0_73, %c0_74], %78 {strides = array<i32>} : memref<1x2x8xf32, #tpu.memory_space<vmem>>, vector<1x2x8xf32>,
    return
  }
  func.func @transform_0(%arg0: i32) -> (i32, i32) {
    %c0_i32 = arith.constant 0 : i32
    %c0_i32_0 = arith.constant 0 : i32
    return %arg0, %c0_i32 : i32, i32
  }
  func.func @transform_1(%arg0: i32) -> (i32, i32) {
    %c0_i32 = arith.constant 0 : i32
    %c0_i32_0 = arith.constant 0 : i32
    %c0_i32_1 = arith.constant 0 : i32
    return %c0_i32, %c0_i32_0 : i32, i32
  }
  func.func @transform_2(%arg0: i32) -> (i32, i32) {
    %c0_i32 = arith.constant 0 : i32
    %c0_i32_0 = arith.constant 0 : i32
    %c0_i32_1 = arith.constant 0 : i32
    return %c0_i32, %c0_i32_0 : i32, i32
  }
  func.func @transform_3(%arg0: i32) -> (i32, i32, i32) {
    %c0_i32 = arith.constant 0 : i32
    %c0_i32_0 = arith.constant 0 : i32
    %c0_i32_1 = arith.constant 0 : i32
    %c0_i32_2 = arith.constant 0 : i32
    return %c0_i32, %c0_i32_0, %c0_i32_1 : i32, i32, i32
  }
  func.func @transform_4(%arg0: i32) -> (i32, i32) {
    %c0_i32 = arith.constant 0 : i32
    %c0_i32_0 = arith.constant 0 : i32
    return %arg0, %c0_i32 : i32, i32
  }
  func.func @transform_5(%arg0: i32) -> (i32, i32, i32) {
    %c0_i32 = arith.constant 0 : i32
    %c0_i32_0 = arith.constant 0 : i32
    %c0_i32_1 = arith.constant 0 : i32
    return %arg0, %c0_i32, %c0_i32_0 : i32, i32, i32
  }
}

module attributes {stable_mosaic.version = 11 : i64} {
  func.func @_pass3_kernel(%arg0: i32, %arg1: memref<128x8xbf16, #tpu.memory_space<vmem>>, %arg2: memref<1x8xf32, #tpu.memory_space<vmem>>, %arg3: memref<1x8xf32, #tpu.memory_space<vmem>>, %arg4: memref<8x32xbf16, #tpu.memory_space<vmem>>, %arg5: memref<128x32xbf16, #tpu.memory_space<vmem>>, %arg6: memref<1x2x32xf32, #tpu.memory_space<vmem>>) attributes {dimension_semantics = [#tpu.dimension_semantics<parallel>], iteration_bounds = array<i64: 1>, scalar_prefetch = 0 : i64, scratch_operands = 0 : i64, tpu.core_type = #tpu.core_type<tc>, window_params = [{transform_indices = @transform_0, window_bounds = array<i64: 128, 8>}, {pipeline_mode = #tpu.pipeline_mode<synchronous>, transform_indices = @transform_1, window_bounds = array<i64: 1, 8>}, {pipeline_mode = #tpu.pipeline_mode<synchronous>, transform_indices = @transform_2, window_bounds = array<i64: 1, 8>}, {pipeline_mode = #tpu.pipeline_mode<synchronous>, transform_indices = @transform_3, window_bounds = array<i64: 8, 32>}, {transform_indices = @transform_4, window_bounds = array<i64: 128, 32>}, {transform_indices = @transform_5, window_bounds = array<i64: 1, 2, 32>}]} {
    %c0 = arith.constant 0 : index
    %c0_0 = arith.constant 0 : index
    %0 = vector.load %arg1[%c0, %c0_0] : memref<128x8xbf16, #tpu.memory_space<vmem>>, vector<128x8xbf16>
    %1 = arith.extf %0 : vector<128x8xbf16> to vector<128x8xf32>
    %c0_1 = arith.constant 0 : index
    %c0_2 = arith.constant 0 : index
    %2 = vector.load %arg2[%c0_1, %c0_2] : memref<1x8xf32, #tpu.memory_space<vmem>>, vector<1x8xf32>
    %3 = vector.broadcast %2 : vector<1x8xf32> to vector<128x8xf32>
    %4 = arith.mulf %1, %3 : vector<128x8xf32>
    %c0_3 = arith.constant 0 : index
    %c0_4 = arith.constant 0 : index
    %5 = vector.load %arg3[%c0_3, %c0_4] : memref<1x8xf32, #tpu.memory_space<vmem>>, vector<1x8xf32>
    %6 = vector.broadcast %5 : vector<1x8xf32> to vector<128x8xf32>
    %7 = arith.addf %4, %6 : vector<128x8xf32>
    %cst = arith.constant 0.000000e+00 : f32
    %8 = vector.broadcast %cst : f32 to vector<128x8xf32>
    %9 = arith.maximumf %7, %8 : vector<128x8xf32>
    %10 = arith.truncf %9 : vector<128x8xf32> to vector<128x8xbf16>
    %c0_5 = arith.constant 0 : index
    %c0_6 = arith.constant 0 : index
    %11 = vector.load %arg4[%c0_5, %c0_6] : memref<8x32xbf16, #tpu.memory_space<vmem>>, vector<8x32xbf16>
    %cst_7 = arith.constant dense<0.000000e+00> : vector<128x32xf32>
    %12 = tpu.matmul %10, %11, %cst_7 {dimension_numbers = #tpu.dot_dimension_numbers<[1], [0], [0], [1], [0, 0, 1, 1], [], []>} : vector<128x8xbf16>, vector<8x32xbf16>, vector<128x32xf32> -> vector<128x32xf32>
    %13 = arith.truncf %12 : vector<128x32xf32> to vector<128x32xbf16>
    %c0_8 = arith.constant 0 : index
    %c0_9 = arith.constant 0 : index
    %14 = vector.load %arg5[%c0_8, %c0_9] : memref<128x32xbf16, #tpu.memory_space<vmem>>, vector<128x32xbf16>
    tpu.vector_store %arg5[%c0_8, %c0_9], %13 {strides = array<i32>} : memref<128x32xbf16, #tpu.memory_space<vmem>>, vector<128x32xbf16>,
    %cst_10 = arith.constant dense<0.000000e+00> : vector<32xf32>
    %15 = vector.multi_reduction <add>, %12, %cst_10 [0] : vector<128x32xf32> to vector<32xf32>
    %16 = vector.shape_cast %15 : vector<32xf32> to vector<1x32xf32>
    %17 = arith.mulf %12, %12 : vector<128x32xf32>
    %cst_11 = arith.constant dense<0.000000e+00> : vector<32xf32>
    %18 = vector.multi_reduction <add>, %17, %cst_11 [0] : vector<128x32xf32> to vector<32xf32>
    %19 = vector.shape_cast %18 : vector<32xf32> to vector<1x32xf32>
    %20 = tpu.concatenate %16, %19 in 0 : vector<1x32xf32>, vector<1x32xf32> -> vector<2x32xf32>
    %21 = vector.shape_cast %20 : vector<2x32xf32> to vector<1x2x32xf32>
    %c0_12 = arith.constant 0 : index
    %c0_13 = arith.constant 0 : index
    %c0_14 = arith.constant 0 : index
    %22 = vector.load %arg6[%c0_12, %c0_13, %c0_14] : memref<1x2x32xf32, #tpu.memory_space<vmem>>, vector<1x2x32xf32>
    tpu.vector_store %arg6[%c0_12, %c0_13, %c0_14], %21 {strides = array<i32>} : memref<1x2x32xf32, #tpu.memory_space<vmem>>, vector<1x2x32xf32>,
    return
  }
  func.func @transform_0(%arg0: i32) -> (i32, i32) {
    %c0_i32 = arith.constant 0 : i32
    %c0_i32_0 = arith.constant 0 : i32
    return %arg0, %c0_i32 : i32, i32
  }
  func.func @transform_1(%arg0: i32) -> (i32, i32) {
    %c0_i32 = arith.constant 0 : i32
    %c0_i32_0 = arith.constant 0 : i32
    %c0_i32_1 = arith.constant 0 : i32
    return %c0_i32, %c0_i32_0 : i32, i32
  }
  func.func @transform_2(%arg0: i32) -> (i32, i32) {
    %c0_i32 = arith.constant 0 : i32
    %c0_i32_0 = arith.constant 0 : i32
    %c0_i32_1 = arith.constant 0 : i32
    return %c0_i32, %c0_i32_0 : i32, i32
  }
  func.func @transform_3(%arg0: i32) -> (i32, i32) {
    %c0_i32 = arith.constant 0 : i32
    %c0_i32_0 = arith.constant 0 : i32
    %c0_i32_1 = arith.constant 0 : i32
    return %c0_i32, %c0_i32_0 : i32, i32
  }
  func.func @transform_4(%arg0: i32) -> (i32, i32) {
    %c0_i32 = arith.constant 0 : i32
    %c0_i32_0 = arith.constant 0 : i32
    return %arg0, %c0_i32 : i32, i32
  }
  func.func @transform_5(%arg0: i32) -> (i32, i32, i32) {
    %c0_i32 = arith.constant 0 : i32
    %c0_i32_0 = arith.constant 0 : i32
    %c0_i32_1 = arith.constant 0 : i32
    return %arg0, %c0_i32, %c0_i32_0 : i32, i32, i32
  }
}

module attributes {stable_mosaic.version = 11 : i64} {
  func.func @kernel(%arg0: i32, %arg1: memref<128x32xbf16, #tpu.memory_space<vmem>>, %arg2: memref<1x32xf32, #tpu.memory_space<vmem>>, %arg3: memref<1x32xf32, #tpu.memory_space<vmem>>, %arg4: memref<128x32xbf16, #tpu.memory_space<vmem>>, %arg5: memref<1x32xf32, #tpu.memory_space<vmem>>, %arg6: memref<1x32xf32, #tpu.memory_space<vmem>>, %arg7: memref<128x32xf32, #tpu.memory_space<vmem>>) attributes {dimension_semantics = [#tpu.dimension_semantics<parallel>], iteration_bounds = array<i64: 1>, scalar_prefetch = 0 : i64, scratch_operands = 0 : i64, tpu.core_type = #tpu.core_type<tc>, window_params = [{transform_indices = @transform_0, window_bounds = array<i64: 128, 32>}, {pipeline_mode = #tpu.pipeline_mode<synchronous>, transform_indices = @transform_1, window_bounds = array<i64: 1, 32>}, {pipeline_mode = #tpu.pipeline_mode<synchronous>, transform_indices = @transform_2, window_bounds = array<i64: 1, 32>}, {transform_indices = @transform_3, window_bounds = array<i64: 128, 32>}, {pipeline_mode = #tpu.pipeline_mode<synchronous>, transform_indices = @transform_4, window_bounds = array<i64: 1, 32>}, {pipeline_mode = #tpu.pipeline_mode<synchronous>, transform_indices = @transform_5, window_bounds = array<i64: 1, 32>}, {transform_indices = @transform_6, window_bounds = array<i64: 128, 32>}]} {
    %c0 = arith.constant 0 : index
    %c0_0 = arith.constant 0 : index
    %0 = vector.load %arg1[%c0, %c0_0] : memref<128x32xbf16, #tpu.memory_space<vmem>>, vector<128x32xbf16>
    %1 = arith.extf %0 : vector<128x32xbf16> to vector<128x32xf32>
    %c0_1 = arith.constant 0 : index
    %c0_2 = arith.constant 0 : index
    %2 = vector.load %arg2[%c0_1, %c0_2] : memref<1x32xf32, #tpu.memory_space<vmem>>, vector<1x32xf32>
    %3 = vector.broadcast %2 : vector<1x32xf32> to vector<128x32xf32>
    %4 = arith.mulf %1, %3 : vector<128x32xf32>
    %c0_3 = arith.constant 0 : index
    %c0_4 = arith.constant 0 : index
    %5 = vector.load %arg3[%c0_3, %c0_4] : memref<1x32xf32, #tpu.memory_space<vmem>>, vector<1x32xf32>
    %6 = vector.broadcast %5 : vector<1x32xf32> to vector<128x32xf32>
    %7 = arith.addf %4, %6 : vector<128x32xf32>
    %c0_5 = arith.constant 0 : index
    %c0_6 = arith.constant 0 : index
    %8 = vector.load %arg4[%c0_5, %c0_6] : memref<128x32xbf16, #tpu.memory_space<vmem>>, vector<128x32xbf16>
    %9 = arith.extf %8 : vector<128x32xbf16> to vector<128x32xf32>
    %c0_7 = arith.constant 0 : index
    %c0_8 = arith.constant 0 : index
    %10 = vector.load %arg5[%c0_7, %c0_8] : memref<1x32xf32, #tpu.memory_space<vmem>>, vector<1x32xf32>
    %11 = vector.broadcast %10 : vector<1x32xf32> to vector<128x32xf32>
    %12 = arith.mulf %9, %11 : vector<128x32xf32>
    %c0_9 = arith.constant 0 : index
    %c0_10 = arith.constant 0 : index
    %13 = vector.load %arg6[%c0_9, %c0_10] : memref<1x32xf32, #tpu.memory_space<vmem>>, vector<1x32xf32>
    %14 = vector.broadcast %13 : vector<1x32xf32> to vector<128x32xf32>
    %15 = arith.addf %12, %14 : vector<128x32xf32>
    %16 = arith.addf %7, %15 : vector<128x32xf32>
    %cst = arith.constant 0.000000e+00 : f32
    %17 = vector.broadcast %cst : f32 to vector<128x32xf32>
    %18 = arith.maximumf %16, %17 : vector<128x32xf32>
    %c0_11 = arith.constant 0 : index
    %c0_12 = arith.constant 0 : index
    %19 = vector.load %arg7[%c0_11, %c0_12] : memref<128x32xf32, #tpu.memory_space<vmem>>, vector<128x32xf32>
    tpu.vector_store %arg7[%c0_11, %c0_12], %18 {strides = array<i32>} : memref<128x32xf32, #tpu.memory_space<vmem>>, vector<128x32xf32>,
    return
  }
  func.func @transform_0(%arg0: i32) -> (i32, i32) {
    %c0_i32 = arith.constant 0 : i32
    %c0_i32_0 = arith.constant 0 : i32
    return %arg0, %c0_i32 : i32, i32
  }
  func.func @transform_1(%arg0: i32) -> (i32, i32) {
    %c0_i32 = arith.constant 0 : i32
    %c0_i32_0 = arith.constant 0 : i32
    %c0_i32_1 = arith.constant 0 : i32
    return %c0_i32, %c0_i32_0 : i32, i32
  }
  func.func @transform_2(%arg0: i32) -> (i32, i32) {
    %c0_i32 = arith.constant 0 : i32
    %c0_i32_0 = arith.constant 0 : i32
    %c0_i32_1 = arith.constant 0 : i32
    return %c0_i32, %c0_i32_0 : i32, i32
  }
  func.func @transform_3(%arg0: i32) -> (i32, i32) {
    %c0_i32 = arith.constant 0 : i32
    %c0_i32_0 = arith.constant 0 : i32
    return %arg0, %c0_i32 : i32, i32
  }
  func.func @transform_4(%arg0: i32) -> (i32, i32) {
    %c0_i32 = arith.constant 0 : i32
    %c0_i32_0 = arith.constant 0 : i32
    %c0_i32_1 = arith.constant 0 : i32
    return %c0_i32, %c0_i32_0 : i32, i32
  }
  func.func @transform_5(%arg0: i32) -> (i32, i32) {
    %c0_i32 = arith.constant 0 : i32
    %c0_i32_0 = arith.constant 0 : i32
    %c0_i32_1 = arith.constant 0 : i32
    return %c0_i32, %c0_i32_0 : i32, i32
  }
  func.func @transform_6(%arg0: i32) -> (i32, i32) {
    %c0_i32 = arith.constant 0 : i32
    %c0_i32_0 = arith.constant 0 : i32
    return %arg0, %c0_i32 : i32, i32
  }
}

</mosaic_0001>

<llo_original>
// kernel: _lambda_.4
$region0: #{_lambda_.4}
  #allocation0 [shape = 'u32[]', space=smem, size = 0x4, offset = 0x4, fixed_abs, tag = 'smem constant byte address 0x4 - core index']
  #allocation1 [shape = 'u32[72,128]{1,0:T(1,128)}', space=vmem, size = 0x9000, scoped, tag = 'internal scratch']
  %s0 = inlined_call_operand.vmem [shape: bf16[128,16], index: 0, kind: input, shape index: {}]
  %s1 = inlined_call_operand.vmem [shape: bf16[16,40], index: 1, kind: input, shape index: {}]
  %s2 = inlined_call_operand.vmem [shape: bf16[128,8], index: 2, kind: output, shape index: {0}]
  %s3 = inlined_call_operand.vmem [shape: bf16[128,32], index: 3, kind: output, shape index: {1}]
  %s4 = inlined_call_operand.vmem [shape: f32[1,2,40], index: 4, kind: output, shape index: {2}]
  %5 = xla_tuple %s2, %s3, %s4
  %s6 = sld [smem:[#allocation0]]
  $region34: #{_lambda_.4} parent=0
    _
  %s8 = ssub.s32 1, %s6
  %s9 = scalar_select 0, %s8, %s6
  // Predicated region
  $region2: #{_lambda_.4} parent=0 // pred_check
    _
  $region3: #{_lambda_.4} parent=0 // pred_check_branch
    %11 = sbr.rel (0) target = $region5
  $region4: #{_lambda_.4} parent=0 // pred_region
    _
  $region5: #{_lambda_.4} parent=0 // pred_fallthru
    _
  // Predicated region
  $region6: #{_lambda_.4} parent=0 // pred_check
    _
  $region7: #{_lambda_.4} parent=0 // pred_check_branch
    %13 = sbr.rel (0) target = $region9
  $region8: #{_lambda_.4} parent=0 // pred_region
    _
  $region9: #{_lambda_.4} parent=0 // pred_fallthru
    _
  %v15 = vld [vmem:[%s0] sm:$0xf]
  %v16 = vld [vmem:[%s0 + $0x4] sm:$0xf]
  %v17 = vld [vmem:[%s0 + $0x8] sm:$0xf]
  %v18 = vld [vmem:[%s0 + $0xc] sm:$0xf]
  %v19 = vld [vmem:[%s0 + $0x10] sm:$0xf]
  %v20 = vld [vmem:[%s0 + $0x14] sm:$0xf]
  %v21 = vld [vmem:[%s0 + $0x18] sm:$0xf]
  %v22 = vld [vmem:[%s0 + $0x1c] sm:$0xf]
  %v23 = vld [vmem:[%s0 + $0x20] sm:$0xf]
  %v24 = vld [vmem:[%s0 + $0x24] sm:$0xf]
  %v25 = vld [vmem:[%s0 + $0x28] sm:$0xf]
  %v26 = vld [vmem:[%s0 + $0x2c] sm:$0xf]
  %v27 = vld [vmem:[%s0 + $0x30] sm:$0xf]
  %v28 = vld [vmem:[%s0 + $0x34] sm:$0xf]
  %v29 = vld [vmem:[%s0 + $0x38] sm:$0xf]
  %v30 = vld [vmem:[%s0 + $0x3c] sm:$0xf]
  %v31 = vld [vmem:[%s1] sm:$0xf]
  %v32 = vld [vmem:[%s1 + $0x4] sm:$0xf]
  %v49 = vunpack.c.l.b16 %v15
  %v50 = vunpack.c.l.b16 %v16
  %v51 = vunpack.c.l.b16 %v17
  %v52 = vunpack.c.l.b16 %v18
  %v53 = vunpack.c.l.b16 %v19
  %v54 = vunpack.c.l.b16 %v20
  %v55 = vunpack.c.l.b16 %v21
  %v56 = vunpack.c.l.b16 %v22
  %v57 = vunpack.c.l.b16 %v23
  %v58 = vunpack.c.l.b16 %v24
  %v59 = vunpack.c.l.b16 %v25
  %v60 = vunpack.c.l.b16 %v26
  %v61 = vunpack.c.l.b16 %v27
  %v62 = vunpack.c.l.b16 %v28
  %v63 = vunpack.c.l.b16 %v29
  %v64 = vunpack.c.l.b16 %v30
  %v65 = vpack.c.b16 %v50, %v49
  %v66 = vpack.c.b16 %v52, %v51
  %v67 = vpack.c.b16 %v54, %v53
  %v68 = vpack.c.b16 %v56, %v55
  %v69 = vpack.c.b16 %v58, %v57
  %v70 = vpack.c.b16 %v60, %v59
  %v71 = vpack.c.b16 %v62, %v61
  %v72 = vpack.c.b16 %v64, %v63
  %v75 = vunpack.c.l.b16 %v31
  %v76 = vunpack.c.l.b16 %v32
  %v77 = vpack.c.b16 %v76, %v75
  %vm79 = vcmask 130048
  %v81 = vsel %vm79, %v65, 0
  %v84 = vsel %vm79, %v66, 0
  %v87 = vsel %vm79, %v67, 0
  %v90 = vsel %vm79, %v68, 0
  %v93 = vsel %vm79, %v69, 0
  %v96 = vsel %vm79, %v70, 0
  %v99 = vsel %vm79, %v71, 0
  %v102 = vsel %vm79, %v72, 0
  %104 = vmatpush.bf16.msra.mxu0 0
  %105 = vmatpush.bf16.msra.mxu0 0
  %106 = vmatpush.bf16.msra.mxu0 0
  %107 = vmatpush.bf16.msra.mxu0 0
  %108 = vmatpush.bf16.msra.mxu0 0
  %109 = vmatpush.bf16.msra.mxu0 0
  %110 = vmatpush.bf16.msra.mxu0 0
  %111 = vmatpush.bf16.msra.mxu0 %v77
  %112 = vmatmul.bf16.gmra.mxu0 %v81
  %v113 = vpop.f32.mrf.mxu0
  %v114 = vadd.f32 0.0, %v113
  %v115 = vpop.f32.mrf.mxu0
  %v116 = vadd.f32 0.0, %v115
  %117 = vmatmul.bf16.gmra.mxu0 %v84
  %v118 = vpop.f32.mrf.mxu0
  %v119 = vadd.f32 0.0, %v118
  %v120 = vpop.f32.mrf.mxu0
  %v121 = vadd.f32 0.0, %v120
  %122 = vmatmul.bf16.gmra.mxu0 %v87
  %v123 = vpop.f32.mrf.mxu0
  %v124 = vadd.f32 0.0, %v123
  %v125 = vpop.f32.mrf.mxu0
  %v126 = vadd.f32 0.0, %v125
  %127 = vmatmul.bf16.gmra.mxu0 %v90
  %v128 = vpop.f32.mrf.mxu0
  %v129 = vadd.f32 0.0, %v128
  %v130 = vpop.f32.mrf.mxu0
  %v131 = vadd.f32 0.0, %v130
  %132 = vmatmul.bf16.gmra.mxu0 %v93
  %v133 = vpop.f32.mrf.mxu0
  %v134 = vadd.f32 0.0, %v133
  %v135 = vpop.f32.mrf.mxu0
  %v136 = vadd.f32 0.0, %v135
  %137 = vmatmul.bf16.gmra.mxu0 %v96
  %v138 = vpop.f32.mrf.mxu0
  %v139 = vadd.f32 0.0, %v138
  %v140 = vpop.f32.mrf.mxu0
  %v141 = vadd.f32 0.0, %v140
  %142 = vmatmul.bf16.gmra.mxu0 %v99
  %v143 = vpop.f32.mrf.mxu0
  %v144 = vadd.f32 0.0, %v143
  %v145 = vpop.f32.mrf.mxu0
  %v146 = vadd.f32 0.0, %v145
  %147 = vmatmul.bf16.gmra.mxu0 %v102
  %v148 = vpop.f32.mrf.mxu0
  %v149 = vadd.f32 0.0, %v148
  %v150 = vpop.f32.mrf.mxu0
  %v151 = vadd.f32 0.0, %v150
  %152 = vdwg.mxu0
  %v153 = vpack.c.bf16 %v114, %v114
  %v154 = vpack.c.bf16 %v116, %v116
  %v155 = vpack.c.bf16 %v119, %v119
  %v156 = vpack.c.bf16 %v121, %v121
  %v157 = vpack.c.bf16 %v124, %v124
  %v158 = vpack.c.bf16 %v126, %v126
  %v159 = vpack.c.bf16 %v129, %v129
  %v160 = vpack.c.bf16 %v131, %v131
  %v161 = vpack.c.bf16 %v134, %v134
  %v162 = vpack.c.bf16 %v136, %v136
  %v163 = vpack.c.bf16 %v139, %v139
  %v164 = vpack.c.bf16 %v141, %v141
  %v165 = vpack.c.bf16 %v144, %v144
  %v166 = vpack.c.bf16 %v146, %v146
  %v167 = vpack.c.bf16 %v149, %v149
  %v168 = vpack.c.bf16 %v151, %v151
  %vm169 = vcmask 60416
  %170 = vst.msk [vmem:[%s2] sm:$0xf] %vm169, %v153
  %171 = vst.msk [vmem:[%s2 + $0x4] sm:$0xf] %vm169, %v154
  %172 = vst.msk [vmem:[%s2 + $0x8] sm:$0xf] %vm169, %v155
  %173 = vst.msk [vmem:[%s2 + $0xc] sm:$0xf] %vm169, %v156
  %174 = vst.msk [vmem:[%s2 + $0x10] sm:$0xf] %vm169, %v157
  %175 = vst.msk [vmem:[%s2 + $0x14] sm:$0xf] %vm169, %v158
  %176 = vst.msk [vmem:[%s2 + $0x18] sm:$0xf] %vm169, %v159
  %177 = vst.msk [vmem:[%s2 + $0x1c] sm:$0xf] %vm169, %v160
  %178 = vst.msk [vmem:[%s2 + $0x20] sm:$0xf] %vm169, %v161
  %179 = vst.msk [vmem:[%s2 + $0x24] sm:$0xf] %vm169, %v162
  %180 = vst.msk [vmem:[%s2 + $0x28] sm:$0xf] %vm169, %v163
  %181 = vst.msk [vmem:[%s2 + $0x2c] sm:$0xf] %vm169, %v164
  %182 = vst.msk [vmem:[%s2 + $0x30] sm:$0xf] %vm169, %v165
  %183 = vst.msk [vmem:[%s2 + $0x34] sm:$0xf] %vm169, %v166
  %184 = vst.msk [vmem:[%s2 + $0x38] sm:$0xf] %vm169, %v167
  %185 = vst.msk [vmem:[%s2 + $0x3c] sm:$0xf] %vm169, %v168
  %202 = vrot.lane.b32.xlu0 %v153, 120
  %v203 = vpop.permute.xlu0 %202
  %204 = vrot.lane.b32.xlu0 %v154, 120
  %v205 = vpop.permute.xlu0 %204
  %206 = vrot.lane.b32.xlu0 %v155, 120
  %v207 = vpop.permute.xlu0 %206
  %208 = vrot.lane.b32.xlu0 %v156, 120
  %v209 = vpop.permute.xlu0 %208
  %210 = vrot.lane.b32.xlu0 %v157, 120
  %v211 = vpop.permute.xlu0 %210
  %212 = vrot.lane.b32.xlu0 %v158, 120
  %v213 = vpop.permute.xlu0 %212
  %214 = vrot.lane.b32.xlu0 %v159, 120
  %v215 = vpop.permute.xlu0 %214
  %216 = vrot.lane.b32.xlu0 %v160, 120
  %v217 = vpop.permute.xlu0 %216
  %218 = vrot.lane.b32.xlu0 %v161, 120
  %v219 = vpop.permute.xlu0 %218
  %220 = vrot.lane.b32.xlu0 %v162, 120
  %v221 = vpop.permute.xlu0 %220
  %222 = vrot.lane.b32.xlu0 %v163, 120
  %v223 = vpop.permute.xlu0 %222
  %224 = vrot.lane.b32.xlu0 %v164, 120
  %v225 = vpop.permute.xlu0 %224
  %226 = vrot.lane.b32.xlu0 %v165, 120
  %v227 = vpop.permute.xlu0 %226
  %228 = vrot.lane.b32.xlu0 %v166, 120
  %v229 = vpop.permute.xlu0 %228
  %230 = vrot.lane.b32.xlu0 %v167, 120
  %v231 = vpop.permute.xlu0 %230
  %232 = vrot.lane.b32.xlu0 %v168, 120
  %v233 = vpop.permute.xlu0 %232
  %vm250 = vcmask 257024
  %251 = vst.msk [vmem:[%s3] sm:$0xf] %vm250, %v203
  %252 = vst.msk [vmem:[%s3 + $0x4] sm:$0xf] %vm250, %v205
  %253 = vst.msk [vmem:[%s3 + $0x8] sm:$0xf] %vm250, %v207
  %254 = vst.msk [vmem:[%s3 + $0xc] sm:$0xf] %vm250, %v209
  %255 = vst.msk [vmem:[%s3 + $0x10] sm:$0xf] %vm250, %v211
  %256 = vst.msk [vmem:[%s3 + $0x14] sm:$0xf] %vm250, %v213
  %257 = vst.msk [vmem:[%s3 + $0x18] sm:$0xf] %vm250, %v215
  %258 = vst.msk [vmem:[%s3 + $0x1c] sm:$0xf] %vm250, %v217
  %259 = vst.msk [vmem:[%s3 + $0x20] sm:$0xf] %vm250, %v219
  %260 = vst.msk [vmem:[%s3 + $0x24] sm:$0xf] %vm250, %v221
  %261 = vst.msk [vmem:[%s3 + $0x28] sm:$0xf] %vm250, %v223
  %262 = vst.msk [vmem:[%s3 + $0x2c] sm:$0xf] %vm250, %v225
  %263 = vst.msk [vmem:[%s3 + $0x30] sm:$0xf] %vm250, %v227
  %264 = vst.msk [vmem:[%s3 + $0x34] sm:$0xf] %vm250, %v229
  %265 = vst.msk [vmem:[%s3 + $0x38] sm:$0xf] %vm250, %v231
  %266 = vst.msk [vmem:[%s3 + $0x3c] sm:$0xf] %vm250, %v233
  %vm267 = vcmask 326656
  %v268 = vsel %vm267, %v114, 0.0
  %v269 = vsel %vm267, %v116, 0.0
  %v270 = vadd.f32 %v268, %v269
  %v271 = vsel %vm267, %v119, 0.0
  %v272 = vadd.f32 %v270, %v271
  %v273 = vsel %vm267, %v121, 0.0
  %v274 = vadd.f32 %v272, %v273
  %v275 = vsel %vm267, %v124, 0.0
  %v276 = vadd.f32 %v274, %v275
  %v277 = vsel %vm267, %v126, 0.0
  %v278 = vadd.f32 %v276, %v277
  %v279 = vsel %vm267, %v129, 0.0
  %v280 = vadd.f32 %v278, %v279
  %v281 = vsel %vm267, %v131, 0.0
  %v282 = vadd.f32 %v280, %v281
  %v283 = vsel %vm267, %v134, 0.0
  %v284 = vadd.f32 %v282, %v283
  %v285 = vsel %vm267, %v136, 0.0
  %v286 = vadd.f32 %v284, %v285
  %v287 = vsel %vm267, %v139, 0.0
  %v288 = vadd.f32 %v286, %v287
  %v289 = vsel %vm267, %v141, 0.0
  %v290 = vadd.f32 %v288, %v289
  %v291 = vsel %vm267, %v144, 0.0
  %v292 = vadd.f32 %v290, %v291
  %v293 = vsel %vm267, %v146, 0.0
  %v294 = vadd.f32 %v292, %v293
  %v295 = vsel %vm267, %v149, 0.0
  %v296 = vadd.f32 %v294, %v295
  %v297 = vsel %vm267, %v151, 0.0
  %v298 = vadd.f32 %v296, %v297
  %v299 = vrot.slane %v298, 4
  %v300 = vadd.f32 %v298, %v299
  %v301 = vrot.slane %v300, 2
  %v302 = vadd.f32 %v300, %v301
  %v303 = vrot.slane %v302, 1
  %v304 = vadd.f32 %v302, %v303
  %v305 = vmul.f32 %v114, %v114
  %v306 = vmul.f32 %v116, %v116
  %v307 = vmul.f32 %v119, %v119
  %v308 = vmul.f32 %v121, %v121
  %v309 = vmul.f32 %v124, %v124
  %v310 = vmul.f32 %v126, %v126
  %v311 = vmul.f32 %v129, %v129
  %v312 = vmul.f32 %v131, %v131
  %v313 = vmul.f32 %v134, %v134
  %v314 = vmul.f32 %v136, %v136
  %v315 = vmul.f32 %v139, %v139
  %v316 = vmul.f32 %v141, %v141
  %v317 = vmul.f32 %v144, %v144
  %v318 = vmul.f32 %v146, %v146
  %v319 = vmul.f32 %v149, %v149
  %v320 = vmul.f32 %v151, %v151
  %v321 = vsel %vm267, %v305, 0.0
  %v322 = vsel %vm267, %v306, 0.0
  %v323 = vadd.f32 %v321, %v322
  %v324 = vsel %vm267, %v307, 0.0
  %v325 = vadd.f32 %v323, %v324
  %v326 = vsel %vm267, %v308, 0.0
  %v327 = vadd.f32 %v325, %v326
  %v328 = vsel %vm267, %v309, 0.0
  %v329 = vadd.f32 %v327, %v328
  %v330 = vsel %vm267, %v310, 0.0
  %v331 = vadd.f32 %v329, %v330
  %v332 = vsel %vm267, %v311, 0.0
  %v333 = vadd.f32 %v331, %v332
  %v334 = vsel %vm267, %v312, 0.0
  %v335 = vadd.f32 %v333, %v334
  %v336 = vsel %vm267, %v313, 0.0
  %v337 = vadd.f32 %v335, %v336
  %v338 = vsel %vm267, %v314, 0.0
  %v339 = vadd.f32 %v337, %v338
  %v340 = vsel %vm267, %v315, 0.0
  %v341 = vadd.f32 %v339, %v340
  %v342 = vsel %vm267, %v316, 0.0
  %v343 = vadd.f32 %v341, %v342
  %v344 = vsel %vm267, %v317, 0.0
  %v345 = vadd.f32 %v343, %v344
  %v346 = vsel %vm267, %v318, 0.0
  %v347 = vadd.f32 %v345, %v346
  %v348 = vsel %vm267, %v319, 0.0
  %v349 = vadd.f32 %v347, %v348
  %v350 = vsel %vm267, %v320, 0.0
  %v351 = vadd.f32 %v349, %v350
  %v352 = vrot.slane %v351, 4
  %v353 = vadd.f32 %v351, %v352
  %v354 = vrot.slane %v353, 2
  %v355 = vadd.f32 %v353, %v354
  %v356 = vrot.slane %v355, 1
  %v357 = vadd.f32 %v355, %v356
  %vm358 = vcmask 1040384
  %v359 = vsel %vm358, %v304, %v357
  %vm360 = vcmask 320512
  %361 = vst.msk [vmem:[%s4] sm:$0x3] %vm360, %v359
  // Predicated region
  $region10: #{_lambda_.4} parent=0 // pred_check
    _
  $region11: #{_lambda_.4} parent=0 // pred_check_branch
    %363 = sbr.rel (0) target = $region13
  $region12: #{_lambda_.4} parent=0 // pred_region
    _
  $region13: #{_lambda_.4} parent=0 // pred_fallthru
    _
  // Predicated region
  $region14: #{_lambda_.4} parent=0 // pred_check
    _
  $region15: #{_lambda_.4} parent=0 // pred_check_branch
    %365 = sbr.rel (0) target = $region17
  $region16: #{_lambda_.4} parent=0 // pred_region
    _
  $region17: #{_lambda_.4} parent=0 // pred_fallthru
    _
  // Predicated region
  $region18: #{_lambda_.4} parent=0 // pred_check
    _
  $region19: #{_lambda_.4} parent=0 // pred_check_branch
    %367 = sbr.rel (0) target = $region21
  $region20: #{_lambda_.4} parent=0 // pred_region
    _
  $region21: #{_lambda_.4} parent=0 // pred_fallthru
    _
  // Predicated region
  $region22: #{_lambda_.4} parent=0 // pred_check
    _
  $region23: #{_lambda_.4} parent=0 // pred_check_branch
    %369 = sbr.rel (0) target = $region25
  $region24: #{_lambda_.4} parent=0 // pred_region
    _
  $region25: #{_lambda_.4} parent=0 // pred_fallthru
    _
  // Predicated region
  $region26: #{_lambda_.4} parent=0 // pred_check
    _
  $region27: #{_lambda_.4} parent=0 // pred_check_branch
    %371 = sbr.rel (0) target = $region29
  $region28: #{_lambda_.4} parent=0 // pred_region
    _
  $region29: #{_lambda_.4} parent=0 // pred_fallthru
    _
  // Predicated region
  $region30: #{_lambda_.4} parent=0 // pred_check
    _
  $region31: #{_lambda_.4} parent=0 // pred_check_branch
    %373 = sbr.rel (0) target = $region33
  $region32: #{_lambda_.4} parent=0 // pred_region
    _
  $region33: #{_lambda_.4} parent=0 // pred_fallthru
    _

// kernel: _lambda_.6
$region0: #{_lambda_.6}
  #allocation0 [shape = 'u32[]', space=smem, size = 0x4, offset = 0x4, fixed_abs, tag = 'smem constant byte address 0x4 - core index']
  #allocation1 [shape = 'u32[72,128]{1,0:T(1,128)}', space=vmem, size = 0x9000, scoped, tag = 'internal scratch']
  %s0 = inlined_call_operand.vmem [shape: bf16[128,8], index: 0, kind: input, shape index: {}]
  %s1 = inlined_call_operand.vmem [shape: f32[1,8], index: 1, kind: input, shape index: {}]
  %s2 = inlined_call_operand.vmem [shape: f32[1,8], index: 2, kind: input, shape index: {}]
  %s3 = inlined_call_operand.vmem [shape: bf16[8,32], index: 3, kind: input, shape index: {}]
  %s4 = inlined_call_operand.vmem [shape: bf16[128,32], index: 4, kind: output, shape index: {0}]
  %s5 = inlined_call_operand.vmem [shape: f32[1,2,32], index: 5, kind: output, shape index: {1}]
  %6 = xla_tuple %s4, %s5
  %s7 = sld [smem:[#allocation0]]
  $region34: #{_lambda_.6} parent=0
    _
  %s9 = ssub.s32 1, %s7
  %s10 = scalar_select 0, %s9, %s7
  // Predicated region
  $region2: #{_lambda_.6} parent=0 // pred_check
    _
  $region3: #{_lambda_.6} parent=0 // pred_check_branch
    %12 = sbr.rel (0) target = $region5
  $region4: #{_lambda_.6} parent=0 // pred_region
    _
  $region5: #{_lambda_.6} parent=0 // pred_fallthru
    _
  // Predicated region
  $region6: #{_lambda_.6} parent=0 // pred_check
    _
  $region7: #{_lambda_.6} parent=0 // pred_check_branch
    %14 = sbr.rel (0) target = $region9
  $region8: #{_lambda_.6} parent=0 // pred_region
    _
  $region9: #{_lambda_.6} parent=0 // pred_fallthru
    _
  // Predicated region
  $region10: #{_lambda_.6} parent=0 // pred_check
    _
  $region11: #{_lambda_.6} parent=0 // pred_check_branch
    %16 = sbr.rel (0) target = $region13
  $region12: #{_lambda_.6} parent=0 // pred_region
    _
  $region13: #{_lambda_.6} parent=0 // pred_fallthru
    _
  // Predicated region
  $region14: #{_lambda_.6} parent=0 // pred_check
    _
  $region15: #{_lambda_.6} parent=0 // pred_check_branch
    %18 = sbr.rel (0) target = $region17
  $region16: #{_lambda_.6} parent=0 // pred_region
    _
  $region17: #{_lambda_.6} parent=0 // pred_fallthru
    _
  %v20 = vld [vmem:[%s0] sm:$0xf]
  %v21 = vld [vmem:[%s0 + $0x4] sm:$0xf]
  %v22 = vld [vmem:[%s0 + $0x8] sm:$0xf]
  %v23 = vld [vmem:[%s0 + $0xc] sm:$0xf]
  %v24 = vld [vmem:[%s0 + $0x10] sm:$0xf]
  %v25 = vld [vmem:[%s0 + $0x14] sm:$0xf]
  %v26 = vld [vmem:[%s0 + $0x18] sm:$0xf]
  %v27 = vld [vmem:[%s0 + $0x1c] sm:$0xf]
  %v28 = vld [vmem:[%s0 + $0x20] sm:$0xf]
  %v29 = vld [vmem:[%s0 + $0x24] sm:$0xf]
  %v30 = vld [vmem:[%s0 + $0x28] sm:$0xf]
  %v31 = vld [vmem:[%s0 + $0x2c] sm:$0xf]
  %v32 = vld [vmem:[%s0 + $0x30] sm:$0xf]
  %v33 = vld [vmem:[%s0 + $0x34] sm:$0xf]
  %v34 = vld [vmem:[%s0 + $0x38] sm:$0xf]
  %v35 = vld [vmem:[%s0 + $0x3c] sm:$0xf]
  %v36 = vunpack.c.l.bf16 %v20
  %v37 = vunpack.c.l.bf16 %v21
  %v38 = vunpack.c.l.bf16 %v22
  %v39 = vunpack.c.l.bf16 %v23
  %v40 = vunpack.c.l.bf16 %v24
  %v41 = vunpack.c.l.bf16 %v25
  %v42 = vunpack.c.l.bf16 %v26
  %v43 = vunpack.c.l.bf16 %v27
  %v44 = vunpack.c.l.bf16 %v28
  %v45 = vunpack.c.l.bf16 %v29
  %v46 = vunpack.c.l.bf16 %v30
  %v47 = vunpack.c.l.bf16 %v31
  %v48 = vunpack.c.l.bf16 %v32
  %v49 = vunpack.c.l.bf16 %v33
  %v50 = vunpack.c.l.bf16 %v34
  %v51 = vunpack.c.l.bf16 %v35
  %v52 = vld [vmem:[%s1] sm:$0x1]
  %v54 = vperm.slane %v52, 0
  %v56 = vmul.f32 %v36, %v54
  %v57 = vmul.f32 %v37, %v54
  %v58 = vmul.f32 %v38, %v54
  %v59 = vmul.f32 %v39, %v54
  %v60 = vmul.f32 %v40, %v54
  %v61 = vmul.f32 %v41, %v54
  %v62 = vmul.f32 %v42, %v54
  %v63 = vmul.f32 %v43, %v54
  %v64 = vmul.f32 %v44, %v54
  %v65 = vmul.f32 %v45, %v54
  %v66 = vmul.f32 %v46, %v54
  %v67 = vmul.f32 %v47, %v54
  %v68 = vmul.f32 %v48, %v54
  %v69 = vmul.f32 %v49, %v54
  %v70 = vmul.f32 %v50, %v54
  %v71 = vmul.f32 %v51, %v54
  %v72 = vld [vmem:[%s2] sm:$0x1]
  %v74 = vperm.slane %v72, 0
  %v76 = vadd.f32 %v56, %v74
  %v77 = vadd.f32 %v57, %v74
  %v78 = vadd.f32 %v58, %v74
  %v79 = vadd.f32 %v59, %v74
  %v80 = vadd.f32 %v60, %v74
  %v81 = vadd.f32 %v61, %v74
  %v82 = vadd.f32 %v62, %v74
  %v83 = vadd.f32 %v63, %v74
  %v84 = vadd.f32 %v64, %v74
  %v85 = vadd.f32 %v65, %v74
  %v86 = vadd.f32 %v66, %v74
  %v87 = vadd.f32 %v67, %v74
  %v88 = vadd.f32 %v68, %v74
  %v89 = vadd.f32 %v69, %v74
  %v90 = vadd.f32 %v70, %v74
  %v91 = vadd.f32 %v71, %v74
  %v92 = vmax.f32 %v76, 0.0
  %v93 = vmax.f32 %v77, 0.0
  %v94 = vmax.f32 %v78, 0.0
  %v95 = vmax.f32 %v79, 0.0
  %v96 = vmax.f32 %v80, 0.0
  %v97 = vmax.f32 %v81, 0.0
  %v98 = vmax.f32 %v82, 0.0
  %v99 = vmax.f32 %v83, 0.0
  %v100 = vmax.f32 %v84, 0.0
  %v101 = vmax.f32 %v85, 0.0
  %v102 = vmax.f32 %v86, 0.0
  %v103 = vmax.f32 %v87, 0.0
  %v104 = vmax.f32 %v88, 0.0
  %v105 = vmax.f32 %v89, 0.0
  %v106 = vmax.f32 %v90, 0.0
  %v107 = vmax.f32 %v91, 0.0
  %v108 = vpack.c.bf16 %v93, %v92
  %v109 = vpack.c.bf16 %v95, %v94
  %v110 = vpack.c.bf16 %v97, %v96
  %v111 = vpack.c.bf16 %v99, %v98
  %v112 = vpack.c.bf16 %v101, %v100
  %v113 = vpack.c.bf16 %v103, %v102
  %v114 = vpack.c.bf16 %v105, %v104
  %v115 = vpack.c.bf16 %v107, %v106
  %v116 = vld [vmem:[%s3] sm:$0xf]
  %vm117 = vcmask 64512
  %v119 = vsel %vm117, %v108, 0
  %v122 = vsel %vm117, %v109, 0
  %v125 = vsel %vm117, %v110, 0
  %v128 = vsel %vm117, %v111, 0
  %v131 = vsel %vm117, %v112, 0
  %v134 = vsel %vm117, %v113, 0
  %v137 = vsel %vm117, %v114, 0
  %v140 = vsel %vm117, %v115, 0
  %vm142 = vcmask 1043456
  %v144 = vsel %vm142, %v116, 0
  %146 = vmatpush.bf16.msra.mxu0 0
  %147 = vmatpush.bf16.msra.mxu0 0
  %148 = vmatpush.bf16.msra.mxu0 0
  %149 = vmatpush.bf16.msra.mxu0 0
  %150 = vmatpush.bf16.msra.mxu0 0
  %151 = vmatpush.bf16.msra.mxu0 0
  %152 = vmatpush.bf16.msra.mxu0 0
  %153 = vmatpush.bf16.msra.mxu0 %v144
  %154 = vmatmul.bf16.gmra.mxu0 %v119
  %v155 = vpop.f32.mrf.mxu0
  %v156 = vadd.f32 0.0, %v155
  %v157 = vpop.f32.mrf.mxu0
  %v158 = vadd.f32 0.0, %v157
  %159 = vmatmul.bf16.gmra.mxu0 %v122
  %v160 = vpop.f32.mrf.mxu0
  %v161 = vadd.f32 0.0, %v160
  %v162 = vpop.f32.mrf.mxu0
  %v163 = vadd.f32 0.0, %v162
  %164 = vmatmul.bf16.gmra.mxu0 %v125
  %v165 = vpop.f32.mrf.mxu0
  %v166 = vadd.f32 0.0, %v165
  %v167 = vpop.f32.mrf.mxu0
  %v168 = vadd.f32 0.0, %v167
  %169 = vmatmul.bf16.gmra.mxu0 %v128
  %v170 = vpop.f32.mrf.mxu0
  %v171 = vadd.f32 0.0, %v170
  %v172 = vpop.f32.mrf.mxu0
  %v173 = vadd.f32 0.0, %v172
  %174 = vmatmul.bf16.gmra.mxu0 %v131
  %v175 = vpop.f32.mrf.mxu0
  %v176 = vadd.f32 0.0, %v175
  %v177 = vpop.f32.mrf.mxu0
  %v178 = vadd.f32 0.0, %v177
  %179 = vmatmul.bf16.gmra.mxu0 %v134
  %v180 = vpop.f32.mrf.mxu0
  %v181 = vadd.f32 0.0, %v180
  %v182 = vpop.f32.mrf.mxu0
  %v183 = vadd.f32 0.0, %v182
  %184 = vmatmul.bf16.gmra.mxu0 %v137
  %v185 = vpop.f32.mrf.mxu0
  %v186 = vadd.f32 0.0, %v185
  %v187 = vpop.f32.mrf.mxu0
  %v188 = vadd.f32 0.0, %v187
  %189 = vmatmul.bf16.gmra.mxu0 %v140
  %v190 = vpop.f32.mrf.mxu0
  %v191 = vadd.f32 0.0, %v190
  %v192 = vpop.f32.mrf.mxu0
  %v193 = vadd.f32 0.0, %v192
  %194 = vdwg.mxu0
  %v195 = vpack.c.bf16 %v156, %v156
  %v196 = vpack.c.bf16 %v158, %v158
  %v197 = vpack.c.bf16 %v161, %v161
  %v198 = vpack.c.bf16 %v163, %v163
  %v199 = vpack.c.bf16 %v166, %v166
  %v200 = vpack.c.bf16 %v168, %v168
  %v201 = vpack.c.bf16 %v171, %v171
  %v202 = vpack.c.bf16 %v173, %v173
  %v203 = vpack.c.bf16 %v176, %v176
  %v204 = vpack.c.bf16 %v178, %v178
  %v205 = vpack.c.bf16 %v181, %v181
  %v206 = vpack.c.bf16 %v183, %v183
  %v207 = vpack.c.bf16 %v186, %v186
  %v208 = vpack.c.bf16 %v188, %v188
  %v209 = vpack.c.bf16 %v191, %v191
  %v210 = vpack.c.bf16 %v193, %v193
  %vm211 = vcmask 257024
  %212 = vst.msk [vmem:[%s4] sm:$0xf] %vm211, %v195
  %213 = vst.msk [vmem:[%s4 + $0x4] sm:$0xf] %vm211, %v196
  %214 = vst.msk [vmem:[%s4 + $0x8] sm:$0xf] %vm211, %v197
  %215 = vst.msk [vmem:[%s4 + $0xc] sm:$0xf] %vm211, %v198
  %216 = vst.msk [vmem:[%s4 + $0x10] sm:$0xf] %vm211, %v199
  %217 = vst.msk [vmem:[%s4 + $0x14] sm:$0xf] %vm211, %v200
  %218 = vst.msk [vmem:[%s4 + $0x18] sm:$0xf] %vm211, %v201
  %219 = vst.msk [vmem:[%s4 + $0x1c] sm:$0xf] %vm211, %v202
  %220 = vst.msk [vmem:[%s4 + $0x20] sm:$0xf] %vm211, %v203
  %221 = vst.msk [vmem:[%s4 + $0x24] sm:$0xf] %vm211, %v204
  %222 = vst.msk [vmem:[%s4 + $0x28] sm:$0xf] %vm211, %v205
  %223 = vst.msk [vmem:[%s4 + $0x2c] sm:$0xf] %vm211, %v206
  %224 = vst.msk [vmem:[%s4 + $0x30] sm:$0xf] %vm211, %v207
  %225 = vst.msk [vmem:[%s4 + $0x34] sm:$0xf] %vm211, %v208
  %226 = vst.msk [vmem:[%s4 + $0x38] sm:$0xf] %vm211, %v209
  %227 = vst.msk [vmem:[%s4 + $0x3c] sm:$0xf] %vm211, %v210
  %vm228 = vcmask 261120
  %v229 = vsel %vm228, %v156, 0.0
  %v230 = vsel %vm228, %v158, 0.0
  %v231 = vadd.f32 %v229, %v230
  %v232 = vsel %vm228, %v161, 0.0
  %v233 = vadd.f32 %v231, %v232
  %v234 = vsel %vm228, %v163, 0.0
  %v235 = vadd.f32 %v233, %v234
  %v236 = vsel %vm228, %v166, 0.0
  %v237 = vadd.f32 %v235, %v236
  %v238 = vsel %vm228, %v168, 0.0
  %v239 = vadd.f32 %v237, %v238
  %v240 = vsel %vm228, %v171, 0.0
  %v241 = vadd.f32 %v239, %v240
  %v242 = vsel %vm228, %v173, 0.0
  %v243 = vadd.f32 %v241, %v242
  %v244 = vsel %vm228, %v176, 0.0
  %v245 = vadd.f32 %v243, %v244
  %v246 = vsel %vm228, %v178, 0.0
  %v247 = vadd.f32 %v245, %v246
  %v248 = vsel %vm228, %v181, 0.0
  %v249 = vadd.f32 %v247, %v248
  %v250 = vsel %vm228, %v183, 0.0
  %v251 = vadd.f32 %v249, %v250
  %v252 = vsel %vm228, %v186, 0.0
  %v253 = vadd.f32 %v251, %v252
  %v254 = vsel %vm228, %v188, 0.0
  %v255 = vadd.f32 %v253, %v254
  %v256 = vsel %vm228, %v191, 0.0
  %v257 = vadd.f32 %v255, %v256
  %v258 = vsel %vm228, %v193, 0.0
  %v259 = vadd.f32 %v257, %v258
  %v260 = vrot.slane %v259, 4
  %v261 = vadd.f32 %v259, %v260
  %v262 = vrot.slane %v261, 2
  %v263 = vadd.f32 %v261, %v262
  %v264 = vrot.slane %v263, 1
  %v265 = vadd.f32 %v263, %v264
  %v266 = vmul.f32 %v156, %v156
  %v267 = vmul.f32 %v158, %v158
  %v268 = vmul.f32 %v161, %v161
  %v269 = vmul.f32 %v163, %v163
  %v270 = vmul.f32 %v166, %v166
  %v271 = vmul.f32 %v168, %v168
  %v272 = vmul.f32 %v171, %v171
  %v273 = vmul.f32 %v173, %v173
  %v274 = vmul.f32 %v176, %v176
  %v275 = vmul.f32 %v178, %v178
  %v276 = vmul.f32 %v181, %v181
  %v277 = vmul.f32 %v183, %v183
  %v278 = vmul.f32 %v186, %v186
  %v279 = vmul.f32 %v188, %v188
  %v280 = vmul.f32 %v191, %v191
  %v281 = vmul.f32 %v193, %v193
  %v282 = vsel %vm228, %v266, 0.0
  %v283 = vsel %vm228, %v267, 0.0
  %v284 = vadd.f32 %v282, %v283
  %v285 = vsel %vm228, %v268, 0.0
  %v286 = vadd.f32 %v284, %v285
  %v287 = vsel %vm228, %v269, 0.0
  %v288 = vadd.f32 %v286, %v287
  %v289 = vsel %vm228, %v270, 0.0
  %v290 = vadd.f32 %v288, %v289
  %v291 = vsel %vm228, %v271, 0.0
  %v292 = vadd.f32 %v290, %v291
  %v293 = vsel %vm228, %v272, 0.0
  %v294 = vadd.f32 %v292, %v293
  %v295 = vsel %vm228, %v273, 0.0
  %v296 = vadd.f32 %v294, %v295
  %v297 = vsel %vm228, %v274, 0.0
  %v298 = vadd.f32 %v296, %v297
  %v299 = vsel %vm228, %v275, 0.0
  %v300 = vadd.f32 %v298, %v299
  %v301 = vsel %vm228, %v276, 0.0
  %v302 = vadd.f32 %v300, %v301
  %v303 = vsel %vm228, %v277, 0.0
  %v304 = vadd.f32 %v302, %v303
  %v305 = vsel %vm228, %v278, 0.0
  %v306 = vadd.f32 %v304, %v305
  %v307 = vsel %vm228, %v279, 0.0
  %v308 = vadd.f32 %v306, %v307
  %v309 = vsel %vm228, %v280, 0.0
  %v310 = vadd.f32 %v308, %v309
  %v311 = vsel %vm228, %v281, 0.0
  %v312 = vadd.f32 %v310, %v311
  %v313 = vrot.slane %v312, 4
  %v314 = vadd.f32 %v312, %v313
  %v315 = vrot.slane %v314, 2
  %v316 = vadd.f32 %v314, %v315
  %v317 = vrot.slane %v316, 1
  %v318 = vadd.f32 %v316, %v317
  %vm319 = vcmask 1040384
  %v320 = vsel %vm319, %v265, %v318
  %vm321 = vcmask 254976
  %322 = vst.msk [vmem:[%s5] sm:$0x3] %vm321, %v320
  // Predicated region
  $region18: #{_lambda_.6} parent=0 // pred_check
    _
  $region19: #{_lambda_.6} parent=0 // pred_check_branch
    %324 = sbr.rel (0) target = $region21
  $region20: #{_lambda_.6} parent=0 // pred_region
    _
  $region21: #{_lambda_.6} parent=0 // pred_fallthru
    _
  // Predicated region
  $region22: #{_lambda_.6} parent=0 // pred_check
    _
  $region23: #{_lambda_.6} parent=0 // pred_check_branch
    %326 = sbr.rel (0) target = $region25
  $region24: #{_lambda_.6} parent=0 // pred_region
    _
  $region25: #{_lambda_.6} parent=0 // pred_fallthru
    _
  // Predicated region
  $region26: #{_lambda_.6} parent=0 // pred_check
    _
  $region27: #{_lambda_.6} parent=0 // pred_check_branch
    %328 = sbr.rel (0) target = $region29
  $region28: #{_lambda_.6} parent=0 // pred_region
    _
  $region29: #{_lambda_.6} parent=0 // pred_fallthru
    _
  // Predicated region
  $region30: #{_lambda_.6} parent=0 // pred_check
    _
  $region31: #{_lambda_.6} parent=0 // pred_check_branch
    %330 = sbr.rel (0) target = $region33
  $region32: #{_lambda_.6} parent=0 // pred_region
    _
  $region33: #{_lambda_.6} parent=0 // pred_fallthru
    _

// kernel: _lambda_.7
$region0: #{_lambda_.7}
  #allocation0 [shape = 'u32[]', space=smem, size = 0x4, offset = 0x4, fixed_abs, tag = 'smem constant byte address 0x4 - core index']
  #allocation1 [shape = 'u32[72,128]{1,0:T(1,128)}', space=vmem, size = 0x9000, scoped, tag = 'internal scratch']
  %s0 = inlined_call_operand.vmem [shape: bf16[128,32], index: 0, kind: input, shape index: {}]
  %s1 = inlined_call_operand.vmem [shape: f32[1,32], index: 1, kind: input, shape index: {}]
  %s2 = inlined_call_operand.vmem [shape: f32[1,32], index: 2, kind: input, shape index: {}]
  %s3 = inlined_call_operand.vmem [shape: bf16[128,32], index: 3, kind: input, shape index: {}]
  %s4 = inlined_call_operand.vmem [shape: f32[1,32], index: 4, kind: input, shape index: {}]
  %s5 = inlined_call_operand.vmem [shape: f32[1,32], index: 5, kind: input, shape index: {}]
  %s6 = inlined_call_operand.hbm [shape: f32[128,32], index: 6, kind: output, shape index: {}]
  %s7 = sld [smem:[#allocation0]]
  $region34: #{_lambda_.7} parent=0
    _
  %s9 = ssub.s32 1, %s7
  %s10 = scalar_select 0, %s9, %s7
  $region1: #{_lambda_.7} parent=0
    #allocation2 [shape = 'u8[65536]{0}', space=vmem, size = 0x10000, scoped, tag = 'output window, operand 0, single buffered']
    #allocation3 [shape = 's32[1]{0}', space=sflag, size = 0x4, scoped, tag = 'scoped memory for _lambda_.7']
    %11 = vsyncpa [#allocation3], 0
    // Predicated region
    $region2: #{_lambda_.7} parent=1 // pred_check
      _
    $region3: #{_lambda_.7} parent=1 // pred_check_branch
      %13 = sbr.rel (0) target = $region5
    $region4: #{_lambda_.7} parent=1 // pred_region
      _
    $region5: #{_lambda_.7} parent=1 // pred_fallthru
      _
    // Predicated region
    $region6: #{_lambda_.7} parent=1 // pred_check
      _
    $region7: #{_lambda_.7} parent=1 // pred_check_branch
      %15 = sbr.rel (0) target = $region9
    $region8: #{_lambda_.7} parent=1 // pred_region
      _
    $region9: #{_lambda_.7} parent=1 // pred_fallthru
      _
    // Predicated region
    $region10: #{_lambda_.7} parent=1 // pred_check
      _
    $region11: #{_lambda_.7} parent=1 // pred_check_branch
      %17 = sbr.rel (0) target = $region13
    $region12: #{_lambda_.7} parent=1 // pred_region
      _
    $region13: #{_lambda_.7} parent=1 // pred_fallthru
      _
    // Predicated region
    $region14: #{_lambda_.7} parent=1 // pred_check
      _
    $region15: #{_lambda_.7} parent=1 // pred_check_branch
      %19 = sbr.rel (0) target = $region17
    $region16: #{_lambda_.7} parent=1 // pred_region
      _
    $region17: #{_lambda_.7} parent=1 // pred_fallthru
      _
    // Predicated region
    $region18: #{_lambda_.7} parent=1 // pred_check
      _
    $region19: #{_lambda_.7} parent=1 // pred_check_branch
      %21 = sbr.rel (0) target = $region21
    $region20: #{_lambda_.7} parent=1 // pred_region
      _
    $region21: #{_lambda_.7} parent=1 // pred_fallthru
      _
    // Predicated region
    $region22: #{_lambda_.7} parent=1 // pred_check
      _
    $region23: #{_lambda_.7} parent=1 // pred_check_branch
      %23 = sbr.rel (0) target = $region25
    $region24: #{_lambda_.7} parent=1 // pred_region
      _
    $region25: #{_lambda_.7} parent=1 // pred_fallthru
      _
    %v24 = vld [vmem:[%s0] sm:$0xf]
    %v25 = vld [vmem:[%s0 + $0x4] sm:$0xf]
    %v26 = vld [vmem:[%s0 + $0x8] sm:$0xf]
    %v27 = vld [vmem:[%s0 + $0xc] sm:$0xf]
    %v28 = vld [vmem:[%s0 + $0x10] sm:$0xf]
    %v29 = vld [vmem:[%s0 + $0x14] sm:$0xf]
    %v30 = vld [vmem:[%s0 + $0x18] sm:$0xf]
    %v31 = vld [vmem:[%s0 + $0x1c] sm:$0xf]
    %v32 = vld [vmem:[%s0 + $0x20] sm:$0xf]
    %v33 = vld [vmem:[%s0 + $0x24] sm:$0xf]
    %v34 = vld [vmem:[%s0 + $0x28] sm:$0xf]
    %v35 = vld [vmem:[%s0 + $0x2c] sm:$0xf]
    %v36 = vld [vmem:[%s0 + $0x30] sm:$0xf]
    %v37 = vld [vmem:[%s0 + $0x34] sm:$0xf]
    %v38 = vld [vmem:[%s0 + $0x38] sm:$0xf]
    %v39 = vld [vmem:[%s0 + $0x3c] sm:$0xf]
    %v40 = vunpack.c.l.bf16 %v24
    %v41 = vunpack.c.l.bf16 %v25
    %v42 = vunpack.c.l.bf16 %v26
    %v43 = vunpack.c.l.bf16 %v27
    %v44 = vunpack.c.l.bf16 %v28
    %v45 = vunpack.c.l.bf16 %v29
    %v46 = vunpack.c.l.bf16 %v30
    %v47 = vunpack.c.l.bf16 %v31
    %v48 = vunpack.c.l.bf16 %v32
    %v49 = vunpack.c.l.bf16 %v33
    %v50 = vunpack.c.l.bf16 %v34
    %v51 = vunpack.c.l.bf16 %v35
    %v52 = vunpack.c.l.bf16 %v36
    %v53 = vunpack.c.l.bf16 %v37
    %v54 = vunpack.c.l.bf16 %v38
    %v55 = vunpack.c.l.bf16 %v39
    %v56 = vld [vmem:[%s1] sm:$0x1]
    %v58 = vperm.slane %v56, 0
    %v60 = vmul.f32 %v40, %v58
    %v61 = vmul.f32 %v41, %v58
    %v62 = vmul.f32 %v42, %v58
    %v63 = vmul.f32 %v43, %v58
    %v64 = vmul.f32 %v44, %v58
    %v65 = vmul.f32 %v45, %v58
    %v66 = vmul.f32 %v46, %v58
    %v67 = vmul.f32 %v47, %v58
    %v68 = vmul.f32 %v48, %v58
    %v69 = vmul.f32 %v49, %v58
    %v70 = vmul.f32 %v50, %v58
    %v71 = vmul.f32 %v51, %v58
    %v72 = vmul.f32 %v52, %v58
    %v73 = vmul.f32 %v53, %v58
    %v74 = vmul.f32 %v54, %v58
    %v75 = vmul.f32 %v55, %v58
    %v76 = vld [vmem:[%s2] sm:$0x1]
    %v78 = vperm.slane %v76, 0
    %v80 = vadd.f32 %v60, %v78
    %v81 = vadd.f32 %v61, %v78
    %v82 = vadd.f32 %v62, %v78
    %v83 = vadd.f32 %v63, %v78
    %v84 = vadd.f32 %v64, %v78
    %v85 = vadd.f32 %v65, %v78
    %v86 = vadd.f32 %v66, %v78
    %v87 = vadd.f32 %v67, %v78
    %v88 = vadd.f32 %v68, %v78
    %v89 = vadd.f32 %v69, %v78
    %v90 = vadd.f32 %v70, %v78
    %v91 = vadd.f32 %v71, %v78
    %v92 = vadd.f32 %v72, %v78
    %v93 = vadd.f32 %v73, %v78
    %v94 = vadd.f32 %v74, %v78
    %v95 = vadd.f32 %v75, %v78
    %v96 = vld [vmem:[%s3] sm:$0xf]
    %v97 = vld [vmem:[%s3 + $0x4] sm:$0xf]
    %v98 = vld [vmem:[%s3 + $0x8] sm:$0xf]
    %v99 = vld [vmem:[%s3 + $0xc] sm:$0xf]
    %v100 = vld [vmem:[%s3 + $0x10] sm:$0xf]
    %v101 = vld [vmem:[%s3 + $0x14] sm:$0xf]
    %v102 = vld [vmem:[%s3 + $0x18] sm:$0xf]
    %v103 = vld [vmem:[%s3 + $0x1c] sm:$0xf]
    %v104 = vld [vmem:[%s3 + $0x20] sm:$0xf]
    %v105 = vld [vmem:[%s3 + $0x24] sm:$0xf]
    %v106 = vld [vmem:[%s3 + $0x28] sm:$0xf]
    %v107 = vld [vmem:[%s3 + $0x2c] sm:$0xf]
    %v108 = vld [vmem:[%s3 + $0x30] sm:$0xf]
    %v109 = vld [vmem:[%s3 + $0x34] sm:$0xf]
    %v110 = vld [vmem:[%s3 + $0x38] sm:$0xf]
    %v111 = vld [vmem:[%s3 + $0x3c] sm:$0xf]
    %v112 = vunpack.c.l.bf16 %v96
    %v113 = vunpack.c.l.bf16 %v97
    %v114 = vunpack.c.l.bf16 %v98
    %v115 = vunpack.c.l.bf16 %v99
    %v116 = vunpack.c.l.bf16 %v100
    %v117 = vunpack.c.l.bf16 %v101
    %v118 = vunpack.c.l.bf16 %v102
    %v119 = vunpack.c.l.bf16 %v103
    %v120 = vunpack.c.l.bf16 %v104
    %v121 = vunpack.c.l.bf16 %v105
    %v122 = vunpack.c.l.bf16 %v106
    %v123 = vunpack.c.l.bf16 %v107
    %v124 = vunpack.c.l.bf16 %v108
    %v125 = vunpack.c.l.bf16 %v109
    %v126 = vunpack.c.l.bf16 %v110
    %v127 = vunpack.c.l.bf16 %v111
    %v128 = vld [vmem:[%s4] sm:$0x1]
    %v130 = vperm.slane %v128, 0
    %v132 = vmul.f32 %v112, %v130
    %v133 = vmul.f32 %v113, %v130
    %v134 = vmul.f32 %v114, %v130
    %v135 = vmul.f32 %v115, %v130
    %v136 = vmul.f32 %v116, %v130
    %v137 = vmul.f32 %v117, %v130
    %v138 = vmul.f32 %v118, %v130
    %v139 = vmul.f32 %v119, %v130
    %v140 = vmul.f32 %v120, %v130
    %v141 = vmul.f32 %v121, %v130
    %v142 = vmul.f32 %v122, %v130
    %v143 = vmul.f32 %v123, %v130
    %v144 = vmul.f32 %v124, %v130
    %v145 = vmul.f32 %v125, %v130
    %v146 = vmul.f32 %v126, %v130
    %v147 = vmul.f32 %v127, %v130
    %v148 = vld [vmem:[%s5] sm:$0x1]
    %v150 = vperm.slane %v148, 0
    %v152 = vadd.f32 %v132, %v150
    %v153 = vadd.f32 %v133, %v150
    %v154 = vadd.f32 %v134, %v150
    %v155 = vadd.f32 %v135, %v150
    %v156 = vadd.f32 %v136, %v150
    %v157 = vadd.f32 %v137, %v150
    %v158 = vadd.f32 %v138, %v150
    %v159 = vadd.f32 %v139, %v150
    %v160 = vadd.f32 %v140, %v150
    %v161 = vadd.f32 %v141, %v150
    %v162 = vadd.f32 %v142, %v150
    %v163 = vadd.f32 %v143, %v150
    %v164 = vadd.f32 %v144, %v150
    %v165 = vadd.f32 %v145, %v150
    %v166 = vadd.f32 %v146, %v150
    %v167 = vadd.f32 %v147, %v150
    %v168 = vadd.f32 %v80, %v152
    %v169 = vadd.f32 %v81, %v153
    %v170 = vadd.f32 %v82, %v154
    %v171 = vadd.f32 %v83, %v155
    %v172 = vadd.f32 %v84, %v156
    %v173 = vadd.f32 %v85, %v157
    %v174 = vadd.f32 %v86, %v158
    %v175 = vadd.f32 %v87, %v159
    %v176 = vadd.f32 %v88, %v160
    %v177 = vadd.f32 %v89, %v161
    %v178 = vadd.f32 %v90, %v162
    %v179 = vadd.f32 %v91, %v163
    %v180 = vadd.f32 %v92, %v164
    %v181 = vadd.f32 %v93, %v165
    %v182 = vadd.f32 %v94, %v166
    %v183 = vadd.f32 %v95, %v167
    %v184 = vmax.f32 %v168, 0.0
    %v185 = vmax.f32 %v169, 0.0
    %v186 = vmax.f32 %v170, 0.0
    %v187 = vmax.f32 %v171, 0.0
    %v188 = vmax.f32 %v172, 0.0
    %v189 = vmax.f32 %v173, 0.0
    %v190 = vmax.f32 %v174, 0.0
    %v191 = vmax.f32 %v175, 0.0
    %v192 = vmax.f32 %v176, 0.0
    %v193 = vmax.f32 %v177, 0.0
    %v194 = vmax.f32 %v178, 0.0
    %v195 = vmax.f32 %v179, 0.0
    %v196 = vmax.f32 %v180, 0.0
    %v197 = vmax.f32 %v181, 0.0
    %v198 = vmax.f32 %v182, 0.0
    %v199 = vmax.f32 %v183, 0.0
    %vm200 = vcmask 261120
    %201 = vst.msk [vmem:[#allocation2] sm:$0xff] %vm200, %v184
    %202 = vst.msk [vmem:[#allocation2 + $0x8] sm:$0xff] %vm200, %v185
    %203 = vst.msk [vmem:[#allocation2 + $0x10] sm:$0xff] %vm200, %v186
    %204 = vst.msk [vmem:[#allocation2 + $0x18] sm:$0xff] %vm200, %v187
    %205 = vst.msk [vmem:[#allocation2 + $0x20] sm:$0xff] %vm200, %v188
    %206 = vst.msk [vmem:[#allocation2 + $0x28] sm:$0xff] %vm200, %v189
    %207 = vst.msk [vmem:[#allocation2 + $0x30] sm:$0xff] %vm200, %v190
    %208 = vst.msk [vmem:[#allocation2 + $0x38] sm:$0xff] %vm200, %v191
    %209 = vst.msk [vmem:[#allocation2 + $0x40] sm:$0xff] %vm200, %v192
    %210 = vst.msk [vmem:[#allocation2 + $0x48] sm:$0xff] %vm200, %v193
    %211 = vst.msk [vmem:[#allocation2 + $0x50] sm:$0xff] %vm200, %v194
    %212 = vst.msk [vmem:[#allocation2 + $0x58] sm:$0xff] %vm200, %v195
    %213 = vst.msk [vmem:[#allocation2 + $0x60] sm:$0xff] %vm200, %v196
    %214 = vst.msk [vmem:[#allocation2 + $0x68] sm:$0xff] %vm200, %v197
    %215 = vst.msk [vmem:[#allocation2 + $0x70] sm:$0xff] %vm200, %v198
    %216 = vst.msk [vmem:[#allocation2 + $0x78] sm:$0xff] %vm200, %v199
    // Predicated region
    $region26: #{_lambda_.7} parent=1 // pred_check
      _
    $region27: #{_lambda_.7} parent=1 // pred_check_branch
      %218 = sbr.rel (0) target = $region29
    $region28: #{_lambda_.7} parent=1 // pred_region
      %220 = vsyncadd [#allocation3], 0
      %s221 = sshll.u32 [#allocation2], 4
      %s222 = int_to_ptr.vmem [resolvable:$true] %s221
      %s223 = sshll.u32 %s6, 4
      %s224 = int_to_ptr.hbm [resolvable:$true] %s223
      %229 = dma.vmem_to_hbm [thread:$0]  %s222, 2048, %s224, [#allocation3], 128, 128, 8
    $region29: #{_lambda_.7} parent=1 // pred_fallthru
      _
    // Predicated region
    $region30: #{_lambda_.7} parent=1 // pred_check
      _
    $region31: #{_lambda_.7} parent=1 // pred_check_branch
      %231 = sbr.rel (0) target = $region33
    $region32: #{_lambda_.7} parent=1 // pred_region
      %233 = dma.done [#allocation3], 2048
    $region33: #{_lambda_.7} parent=1 // pred_fallthru
      _
    %234 = vsyncpa [#allocation3], 1

// kernel: _lambda_.5
$region0: #{_lambda_.5}
  #allocation0 [shape = 'u32[]', space=smem, size = 0x4, offset = 0x4, fixed_abs, tag = 'smem constant byte address 0x4 - core index']
  #allocation1 [shape = 'u32[72,128]{1,0:T(1,128)}', space=vmem, size = 0x9000, scoped, tag = 'internal scratch']
  #allocation2 [shape = 'bf16[10,10,8]{2,1,0:T(8,128)(2,1)}', space=vmem, size = 0xa000, scoped, tag = 'scratch operand']
  %s0 = inlined_call_operand.vmem [shape: bf16[128,8], index: 0, kind: input, shape index: {}]
  %s1 = inlined_call_operand.vmem [shape: f32[1,8], index: 1, kind: input, shape index: {}]
  %s2 = inlined_call_operand.vmem [shape: f32[1,8], index: 2, kind: input, shape index: {}]
  %s3 = inlined_call_operand.vmem [shape: bf16[9,8,8], index: 3, kind: input, shape index: {}]
  %s4 = inlined_call_operand.vmem [shape: bf16[128,8], index: 4, kind: output, shape index: {0}]
  %s5 = inlined_call_operand.vmem [shape: f32[2,2,8], index: 5, kind: output, shape index: {1}]
  %6 = xla_tuple %s4, %s5
  %s7 = sld [smem:[#allocation0]]
  $region57: #{_lambda_.5} parent=0
    _
  %s9 = ssub.s32 1, %s7
  %s10 = scalar_select 0, %s9, %s7
  loop: start=0, step=1, limit=4
  $region2: #{_lambda_.5} parent=0 // loop_pre_header
    _
  $region3: #{_lambda_.5} parent=0 // loop_header
    %s12 = sphi 0, %s16
    %p13 = scmp.ge.s32.totalorder %s12, 4
    %s22 = sphi 0, %s24
    %s25 = sphi 0, %s22
    %s26 = sphi 0, %s25
    %s42 = sphi 0, %s26
    %s46 = sphi 0, %s46
    %s48 = sphi 0, %s46
    %s49 = sphi 0, %s48
    %s63 = sphi 0, %s49
    %s67 = sphi 0, %s67
    %s69 = sphi 0, %s67
    %s70 = sphi 0, %s69
    %s84 = sphi 0, %s70
    %s88 = sphi 0, %s88
    %s90 = sphi 0, %s88
    %s91 = sphi 0, %s90
    %s105 = sphi 0, %s91
    %s111 = sphi 0, %s113
    %s114 = sphi 0, %s111
    %s115 = sphi 0, %s114
    %s131 = sphi 0, %s115
    %s137 = sphi 0, %s139
    %s140 = sphi 0, %s137
    %s141 = sphi 0, %s140
    %s157 = sphi 0, %s141
  $region4: #{_lambda_.5} parent=0 // loop_header_branch
    %15 = sbr.rel (%p13) target = $region8
  $region5: #{_lambda_.5} parent=0 // loop_body
    %s17 = ssub.s32 %s12, 1
    %s18 = ssub.s32 %s12, 2
    %s19 = sadd.s32 %s12, 1
    %s20 = ssub.s32 %s12, %s19
    %p21 = scmp.eq.s32.totalorder %s20, 0
    %s23 = sadd.s32 %s22, 1
    %s24 = scalar_select %p21, %s22, %s23
    %p27 = pneg %p21
    %p28 = scmp.eq.s32.totalorder %s12, 1
    %p29 = por %p27, %p28
    %p30 = scmp.ne.s32.totalorder %s22, %s25
    %p31 = scmp.eq.s32.totalorder %s12, 0
    %p32 = por %p30, %p31
    %p33 = scmp.ne.s32.totalorder %s22, %s25
    %p34 = scmp.eq.s32.totalorder %s17, 1
    %p35 = por %p33, %p34
    %p36 = scmp.ne.s32.totalorder %s25, %s26
    %p37 = scmp.eq.s32.totalorder %s17, 0
    %p38 = por %p36, %p37
    %p39 = scmp.ne.s32.totalorder %s25, %s26
    %p40 = scmp.eq.s32.totalorder %s18, 1
    %p41 = por %p39, %p40
    %p43 = scmp.ne.s32.totalorder %s26, %s42
    %p44 = scmp.eq.s32.totalorder %s18, 0
    %p45 = por %p43, %p44
    %s47 = sadd.s32 %s46, 1
    %p50 = scmp.eq.s32.totalorder %s12, 1
    %p51 = scmp.ne.s32.totalorder %s46, %s48
    %p52 = scmp.eq.s32.totalorder %s12, 0
    %p53 = por %p51, %p52
    %p54 = scmp.ne.s32.totalorder %s46, %s48
    %p55 = scmp.eq.s32.totalorder %s17, 1
    %p56 = por %p54, %p55
    %p57 = scmp.ne.s32.totalorder %s48, %s49
    %p58 = scmp.eq.s32.totalorder %s17, 0
    %p59 = por %p57, %p58
    %p60 = scmp.ne.s32.totalorder %s48, %s49
    %p61 = scmp.eq.s32.totalorder %s18, 1
    %p62 = por %p60, %p61
    %p64 = scmp.ne.s32.totalorder %s49, %s63
    %p65 = scmp.eq.s32.totalorder %s18, 0
    %p66 = por %p64, %p65
    %s68 = sadd.s32 %s67, 1
    %p71 = scmp.eq.s32.totalorder %s12, 1
    %p72 = scmp.ne.s32.totalorder %s67, %s69
    %p73 = scmp.eq.s32.totalorder %s12, 0
    %p74 = por %p72, %p73
    %p75 = scmp.ne.s32.totalorder %s67, %s69
    %p76 = scmp.eq.s32.totalorder %s17, 1
    %p77 = por %p75, %p76
    %p78 = scmp.ne.s32.totalorder %s69, %s70
    %p79 = scmp.eq.s32.totalorder %s17, 0
    %p80 = por %p78, %p79
    %p81 = scmp.ne.s32.totalorder %s69, %s70
    %p82 = scmp.eq.s32.totalorder %s18, 1
    %p83 = por %p81, %p82
    %p85 = scmp.ne.s32.totalorder %s70, %s84
    %p86 = scmp.eq.s32.totalorder %s18, 0
    %p87 = por %p85, %p86
    %s89 = sadd.s32 %s88, 1
    %p92 = scmp.eq.s32.totalorder %s12, 1
    %p93 = scmp.ne.s32.totalorder %s88, %s90
    %p94 = scmp.eq.s32.totalorder %s12, 0
    %p95 = por %p93, %p94
    %p96 = scmp.ne.s32.totalorder %s88, %s90
    %p97 = scmp.eq.s32.totalorder %s17, 1
    %p98 = por %p96, %p97
    %p99 = scmp.ne.s32.totalorder %s90, %s91
    %p100 = scmp.eq.s32.totalorder %s17, 0
    %p101 = por %p99, %p100
    %p102 = scmp.ne.s32.totalorder %s90, %s91
    %p103 = scmp.eq.s32.totalorder %s18, 1
    %p104 = por %p102, %p103
    %p106 = scmp.ne.s32.totalorder %s91, %s105
    %p107 = scmp.eq.s32.totalorder %s18, 0
    %p108 = por %p106, %p107
    %s109 = ssub.s32 %s12, %s19
    %p110 = scmp.eq.s32.totalorder %s109, 0
    %s112 = sadd.s32 %s111, 1
    %s113 = scalar_select %p110, %s111, %s112
    %p116 = pneg %p110
    %p117 = scmp.eq.s32.totalorder %s12, 1
    %p118 = por %p116, %p117
    %p119 = scmp.ne.s32.totalorder %s111, %s114
    %p120 = scmp.eq.s32.totalorder %s12, 0
    %p121 = por %p119, %p120
    %p122 = scmp.ne.s32.totalorder %s111, %s114
    %p123 = scmp.eq.s32.totalorder %s17, 1
    %p124 = por %p122, %p123
    %p125 = scmp.ne.s32.totalorder %s114, %s115
    %p126 = scmp.eq.s32.totalorder %s17, 0
    %p127 = por %p125, %p126
    %p128 = scmp.ne.s32.totalorder %s114, %s115
    %p129 = scmp.eq.s32.totalorder %s18, 1
    %p130 = por %p128, %p129
    %p132 = scmp.ne.s32.totalorder %s115, %s131
    %p133 = scmp.eq.s32.totalorder %s18, 0
    %p134 = por %p132, %p133
    %s135 = ssub.s32 %s12, %s19
    %p136 = scmp.eq.s32.totalorder %s135, 0
    %s138 = sadd.s32 %s137, 1
    %s139 = scalar_select %p136, %s137, %s138
    %p142 = pneg %p136
    %p143 = scmp.eq.s32.totalorder %s12, 1
    %p144 = por %p142, %p143
    %p145 = scmp.ne.s32.totalorder %s137, %s140
    %p146 = scmp.eq.s32.totalorder %s12, 0
    %p147 = por %p145, %p146
    %p148 = scmp.ne.s32.totalorder %s137, %s140
    %p149 = scmp.eq.s32.totalorder %s17, 1
    %p150 = por %p148, %p149
    %p151 = scmp.ne.s32.totalorder %s140, %s141
    %p152 = scmp.eq.s32.totalorder %s17, 0
    %p153 = por %p151, %p152
    %p154 = scmp.ne.s32.totalorder %s140, %s141
    %p155 = scmp.eq.s32.totalorder %s18, 1
    %p156 = por %p154, %p155
    %p158 = scmp.ne.s32.totalorder %s141, %s157
    %p159 = scmp.eq.s32.totalorder %s18, 0
    %p160 = por %p158, %p159
    %p161 = scmp.le.s32.totalorder 1, %s12
    %p162 = scmp.lt.s32.totalorder %s12, 3
    %p163 = pnand %p161, %p162
    %p164 = pneg %p163
    // Predicated region
    $region9: #{_lambda_.5} parent=5 // pred_check
      _
    $region10: #{_lambda_.5} parent=5 // pred_check_branch
      %166 = sbr.rel (%p163) target = $region12
    $region11: #{_lambda_.5} parent=5 // pred_region
      %s167 = ssub.s32 %s12, 1
      // Predicated region
      $region13: #{_lambda_.5} parent=11 // pred_check
        %p168 = pneg %p59
      $region14: #{_lambda_.5} parent=11 // pred_check_branch
        %170 = sbr.rel (%p168) target = $region16
      $region15: #{_lambda_.5} parent=11 // pred_region
        _
      $region16: #{_lambda_.5} parent=11 // pred_fallthru
        _
      // Predicated region
      $region17: #{_lambda_.5} parent=11 // pred_check
        %p171 = pneg %p80
      $region18: #{_lambda_.5} parent=11 // pred_check_branch
        %173 = sbr.rel (%p171) target = $region20
      $region19: #{_lambda_.5} parent=11 // pred_region
        _
      $region20: #{_lambda_.5} parent=11 // pred_fallthru
        _
      // Predicated region
      $region21: #{_lambda_.5} parent=11 // pred_check
        %p174 = pneg %p101
      $region22: #{_lambda_.5} parent=11 // pred_check_branch
        %176 = sbr.rel (%p174) target = $region24
      $region23: #{_lambda_.5} parent=11 // pred_region
        _
      $region24: #{_lambda_.5} parent=11 // pred_fallthru
        _
    $region12: #{_lambda_.5} parent=5 // pred_fallthru
      _
    %p177 = scmp.lt.s32.totalorder %s12, 2
    // Predicated region
    $region25: #{_lambda_.5} parent=5 // pred_check
      %p178 = pneg %p177
    $region26: #{_lambda_.5} parent=5 // pred_check_branch
      %180 = sbr.rel (%p178) target = $region28
    $region27: #{_lambda_.5} parent=5 // pred_region
      // Predicated region
      $region29: #{_lambda_.5} parent=27 // pred_check
        %p181 = pneg %p32
      $region30: #{_lambda_.5} parent=27 // pred_check_branch
        %183 = sbr.rel (%p181) target = $region32
      $region31: #{_lambda_.5} parent=27 // pred_region
        %s184 = smul.u32 8, %s12
        %p185 = scmp.lt.s32.totalorder %s184, 15
        %s186 = scalar_select %p185, %s184, 15
        %s187 = smul.addr %s186, 4
        %s188 = scalar_lea.vmem %s0, %s187
        %s189 = smul.u32 8, %s12
      $region32: #{_lambda_.5} parent=27 // pred_fallthru
        _
    $region28: #{_lambda_.5} parent=5 // pred_fallthru
      _
    %p190 = scmp.le.s32.totalorder 1, %s12
    %p191 = scmp.lt.s32.totalorder %s12, 3
    %p192 = pnand %p190, %p191
    %p193 = pneg %p192
    // Predicated region
    $region33: #{_lambda_.5} parent=5 // pred_check
      _
    $region34: #{_lambda_.5} parent=5 // pred_check_branch
      %195 = sbr.rel (%p192) target = $region36
    $region35: #{_lambda_.5} parent=5 // pred_region
      %s196 = ssub.s32 %s12, 1
      %s197 = smul.u32 8, %s17
      %p198 = scmp.lt.s32.totalorder %s197, 15
      %s199 = scalar_select %p198, %s197, 15
      %s200 = smul.addr %s199, 4
      %s201 = scalar_lea.vmem %s0, %s200
      %p202 = pneg %p38
      %p203 = pneg %p35
      %p204 = pneg %p59
      %p205 = pneg %p56
      %p206 = pneg %p80
      %p207 = pneg %p77
      %p208 = pneg %p101
      %p209 = pneg %p98
      %p210 = pneg %p127
      %p211 = pneg %p124
      %s212 = smul.u32 8, %s17
      %p213 = scmp.lt.s32.totalorder %s212, 15
      %s214 = scalar_select %p213, %s212, 15
      %s215 = smul.addr %s214, 4
      %s216 = scalar_lea.vmem %s4, %s215
      %p217 = pneg %p153
      %p218 = pneg %p150
      %p219 = scmp.lt.s32.totalorder %s17, 1
      %s220 = scalar_select %p219, %s17, 1
      %s221 = smul.addr %s220, 2
      %s222 = scalar_lea.vmem %s5, %s221
      %s223 = smul.u32 8, %s17
      %p224 = scmp.lt.s32.totalorder %s223, 15
      %s225 = scalar_select %p224, %s223, 15
      %s226 = smul.addr %s225, 4
      %s227 = scalar_lea.vmem %s0, %s226
      %s228 = smul.u32 8, %s17
      %s229 = smul.u32 8, %s17
      %p230 = scmp.lt.s32.totalorder %s229, 15
      %s231 = scalar_select %p230, %s229, 15
      %s232 = smul.addr %s231, 4
      %s233 = scalar_lea.vmem %s4, %s232
      %s234 = smul.u32 8, %s17
      %p235 = scmp.lt.s32.totalorder %s17, 1
      %s236 = scalar_select %p235, %s17, 1
      %s237 = smul.addr %s236, 2
      %s238 = scalar_lea.vmem %s5, %s237
      %vm240 = vcmask 60416
      %241 = vst.msk [vmem:[#allocation2] sm:$0xf] %vm240, 0
      %vm242 = vcmask 57344
      %243 = vst.msk [vmem:[#allocation2 + $0x4] sm:$0x1] %vm242, 0
      %244 = vst.msk [vmem:[#allocation2 + $0x8] sm:$0xf] %vm240, 0
      %245 = vst.msk [vmem:[#allocation2 + $0xc] sm:$0x1] %vm242, 0
      %246 = vst.msk [vmem:[#allocation2 + $0x10] sm:$0xf] %vm240, 0
      %247 = vst.msk [vmem:[#allocation2 + $0x14] sm:$0x1] %vm242, 0
      %248 = vst.msk [vmem:[#allocation2 + $0x18] sm:$0xf] %vm240, 0
      %249 = vst.msk [vmem:[#allocation2 + $0x1c] sm:$0x1] %vm242, 0
      %250 = vst.msk [vmem:[#allocation2 + $0x20] sm:$0xf] %vm240, 0
      %251 = vst.msk [vmem:[#allocation2 + $0x24] sm:$0x1] %vm242, 0
      %252 = vst.msk [vmem:[#allocation2 + $0x28] sm:$0xf] %vm240, 0
      %253 = vst.msk [vmem:[#allocation2 + $0x2c] sm:$0x1] %vm242, 0
      %254 = vst.msk [vmem:[#allocation2 + $0x30] sm:$0xf] %vm240, 0
      %255 = vst.msk [vmem:[#allocation2 + $0x34] sm:$0x1] %vm242, 0
      %256 = vst.msk [vmem:[#allocation2 + $0x38] sm:$0xf] %vm240, 0
      %257 = vst.msk [vmem:[#allocation2 + $0x3c] sm:$0x1] %vm242, 0
      %258 = vst.msk [vmem:[#allocation2 + $0x40] sm:$0xf] %vm240, 0
      %259 = vst.msk [vmem:[#allocation2 + $0x44] sm:$0x1] %vm242, 0
      %260 = vst.msk [vmem:[#allocation2 + $0x48] sm:$0xf] %vm240, 0
      %261 = vst.msk [vmem:[#allocation2 + $0x4c] sm:$0x1] %vm242, 0
      %v262 = vld [vmem:[%s227] sm:$0xf]
      %v263 = vld [vmem:[%s227 + $0x4] sm:$0xf]
      %v264 = vld [vmem:[%s227 + $0x8] sm:$0xf]
      %v265 = vld [vmem:[%s227 + $0xc] sm:$0xf]
      %v266 = vld [vmem:[%s227 + $0x10] sm:$0xf]
      %v267 = vld [vmem:[%s227 + $0x14] sm:$0xf]
      %v268 = vld [vmem:[%s227 + $0x18] sm:$0xf]
      %v269 = vld [vmem:[%s227 + $0x1c] sm:$0xf]
      %v270 = vunpack.c.l.bf16 %v262
      %v271 = vunpack.c.l.bf16 %v263
      %v272 = vunpack.c.l.bf16 %v264
      %v273 = vunpack.c.l.bf16 %v265
      %v274 = vunpack.c.l.bf16 %v266
      %v275 = vunpack.c.l.bf16 %v267
      %v276 = vunpack.c.l.bf16 %v268
      %v277 = vunpack.c.l.bf16 %v269
      %v278 = vld [vmem:[%s1] sm:$0x1]
      %v280 = vperm.slane %v278, 0
      %v282 = vmul.f32 %v270, %v280
      %v283 = vmul.f32 %v271, %v280
      %v284 = vmul.f32 %v272, %v280
      %v285 = vmul.f32 %v273, %v280
      %v286 = vmul.f32 %v274, %v280
      %v287 = vmul.f32 %v275, %v280
      %v288 = vmul.f32 %v276, %v280
      %v289 = vmul.f32 %v277, %v280
      %v290 = vld [vmem:[%s2] sm:$0x1]
      %v292 = vperm.slane %v290, 0
      %v294 = vadd.f32 %v282, %v292
      %v295 = vadd.f32 %v283, %v292
      %v296 = vadd.f32 %v284, %v292
      %v297 = vadd.f32 %v285, %v292
      %v298 = vadd.f32 %v286, %v292
      %v299 = vadd.f32 %v287, %v292
      %v300 = vadd.f32 %v288, %v292
      %v301 = vadd.f32 %v289, %v292
      %v302 = vmax.f32 %v294, 0.0
      %v303 = vmax.f32 %v295, 0.0
      %v304 = vmax.f32 %v296, 0.0
      %v305 = vmax.f32 %v297, 0.0
      %v306 = vmax.f32 %v298, 0.0
      %v307 = vmax.f32 %v299, 0.0
      %v308 = vmax.f32 %v300, 0.0
      %v309 = vmax.f32 %v301, 0.0
      %v310 = vpack.c.bf16 %v302, %v302
      %v311 = vpack.c.bf16 %v303, %v303
      %v312 = vpack.c.bf16 %v304, %v304
      %v313 = vpack.c.bf16 %v305, %v305
      %v314 = vpack.c.bf16 %v306, %v306
      %v315 = vpack.c.bf16 %v307, %v307
      %v316 = vpack.c.bf16 %v308, %v308
      %v317 = vpack.c.bf16 %v309, %v309
      %v319 = vshrl.u32 %v310, 16
      %v321 = vrot.slane %v319, 7
      %v322 = vshll.u32 %v310, 16
      %v324 = vor.u32 %v321, %v322
      %v325 = vrot.slane %v321, 4
      %v327 = vshrl.u32 %v311, 16
      %v329 = vrot.slane %v327, 7
      %v330 = vshll.u32 %v311, 16
      %v332 = vor.u32 %v329, %v330
      %v333 = vrot.slane %v329, 4
      %v335 = vshrl.u32 %v312, 16
      %v337 = vrot.slane %v335, 7
      %v338 = vshll.u32 %v312, 16
      %v340 = vor.u32 %v337, %v338
      %v341 = vrot.slane %v337, 4
      %v343 = vshrl.u32 %v313, 16
      %v345 = vrot.slane %v343, 7
      %v346 = vshll.u32 %v313, 16
      %v348 = vor.u32 %v345, %v346
      %v349 = vrot.slane %v345, 4
      %v351 = vshrl.u32 %v314, 16
      %v353 = vrot.slane %v351, 7
      %v354 = vshll.u32 %v314, 16
      %v356 = vor.u32 %v353, %v354
      %v357 = vrot.slane %v353, 4
      %v359 = vshrl.u32 %v315, 16
      %v361 = vrot.slane %v359, 7
      %v362 = vshll.u32 %v315, 16
      %v364 = vor.u32 %v361, %v362
      %v365 = vrot.slane %v361, 4
      %v367 = vshrl.u32 %v316, 16
      %v369 = vrot.slane %v367, 7
      %v370 = vshll.u32 %v316, 16
      %v372 = vor.u32 %v369, %v370
      %v373 = vrot.slane %v369, 4
      %v375 = vshrl.u32 %v317, 16
      %v377 = vrot.slane %v375, 7
      %v378 = vshll.u32 %v317, 16
      %v380 = vor.u32 %v377, %v378
      %v381 = vrot.slane %v377, 4
      %s398 = scalar_lea.vmem [#allocation2], 8
      %vm399 = vcmask 60416
      %vm400 = vsmask.f32 7938
      %vm401 = vmand %vm399, %vm400
      %v402 = vld [vmem:[%s398] sm:$0xf]
      %v403 = vsel %vm401, %v324, %v402
      %404 = vst [vmem:[%s398] sm:$0xf] %v403
      %vm405 = vcmask 57344
      %vm406 = vsmask.f32 256
      %vm407 = vmand %vm405, %vm406
      %v408 = vld [vmem:[%s398 + $0x4] sm:$0x1]
      %v409 = vsel %vm407, %v325, %v408
      %410 = vst [vmem:[%s398 + $0x4] sm:$0x1] %v409
      %v411 = vld [vmem:[%s398 + $0x8] sm:$0xf]
      %v412 = vsel %vm401, %v332, %v411
      %413 = vst [vmem:[%s398 + $0x8] sm:$0xf] %v412
      %v414 = vld [vmem:[%s398 + $0xc] sm:$0x1]
      %v415 = vsel %vm407, %v333, %v414
      %416 = vst [vmem:[%s398 + $0xc] sm:$0x1] %v415
      %v417 = vld [vmem:[%s398 + $0x10] sm:$0xf]
      %v418 = vsel %vm401, %v340, %v417
      %419 = vst [vmem:[%s398 + $0x10] sm:$0xf] %v418
      %v420 = vld [vmem:[%s398 + $0x14] sm:$0x1]
      %v421 = vsel %vm407, %v341, %v420
      %422 = vst [vmem:[%s398 + $0x14] sm:$0x1] %v421
      %v423 = vld [vmem:[%s398 + $0x18] sm:$0xf]
      %v424 = vsel %vm401, %v348, %v423
      %425 = vst [vmem:[%s398 + $0x18] sm:$0xf] %v424
      %v426 = vld [vmem:[%s398 + $0x1c] sm:$0x1]
      %v427 = vsel %vm407, %v349, %v426
      %428 = vst [vmem:[%s398 + $0x1c] sm:$0x1] %v427
      %v429 = vld [vmem:[%s398 + $0x20] sm:$0xf]
      %v430 = vsel %vm401, %v356, %v429
      %431 = vst [vmem:[%s398 + $0x20] sm:$0xf] %v430
      %v432 = vld [vmem:[%s398 + $0x24] sm:$0x1]
      %v433 = vsel %vm407, %v357, %v432
      %434 = vst [vmem:[%s398 + $0x24] sm:$0x1] %v433
      %v435 = vld [vmem:[%s398 + $0x28] sm:$0xf]
      %v436 = vsel %vm401, %v364, %v435
      %437 = vst [vmem:[%s398 + $0x28] sm:$0xf] %v436
      %v438 = vld [vmem:[%s398 + $0x2c] sm:$0x1]
      %v439 = vsel %vm407, %v365, %v438
      %440 = vst [vmem:[%s398 + $0x2c] sm:$0x1] %v439
      %v441 = vld [vmem:[%s398 + $0x30] sm:$0xf]
      %v442 = vsel %vm401, %v372, %v441
      %443 = vst [vmem:[%s398 + $0x30] sm:$0xf] %v442
      %v444 = vld [vmem:[%s398 + $0x34] sm:$0x1]
      %v445 = vsel %vm407, %v373, %v444
      %446 = vst [vmem:[%s398 + $0x34] sm:$0x1] %v445
      %v447 = vld [vmem:[%s398 + $0x38] sm:$0xf]
      %v448 = vsel %vm401, %v380, %v447
      %449 = vst [vmem:[%s398 + $0x38] sm:$0xf] %v448
      %v450 = vld [vmem:[%s398 + $0x3c] sm:$0x1]
      %v451 = vsel %vm407, %v381, %v450
      %452 = vst [vmem:[%s398 + $0x3c] sm:$0x1] %v451
      %v453 = vld [vmem:[#allocation2] sm:$0xf]
      %v454 = vld [vmem:[#allocation2 + $0x8] sm:$0xf]
      %v455 = vld [vmem:[#allocation2 + $0x10] sm:$0xf]
      %v456 = vld [vmem:[#allocation2 + $0x18] sm:$0xf]
      %v457 = vld [vmem:[#allocation2 + $0x20] sm:$0xf]
      %v458 = vld [vmem:[#allocation2 + $0x28] sm:$0xf]
      %v459 = vld [vmem:[#allocation2 + $0x30] sm:$0xf]
      %v460 = vld [vmem:[#allocation2 + $0x38] sm:$0xf]
      %v461 = vld [vmem:[%s3] sm:$0xf]
      %v462 = vld [vmem:[#allocation2 + $0x4] sm:$0x1]
      %v463 = vld [vmem:[#allocation2 + $0xc] sm:$0x1]
      %v464 = vld [vmem:[#allocation2 + $0x14] sm:$0x1]
      %v465 = vld [vmem:[#allocation2 + $0x1c] sm:$0x1]
      %v466 = vld [vmem:[#allocation2 + $0x24] sm:$0x1]
      %v467 = vld [vmem:[#allocation2 + $0x2c] sm:$0x1]
      %v468 = vld [vmem:[#allocation2 + $0x34] sm:$0x1]
      %v469 = vld [vmem:[#allocation2 + $0x3c] sm:$0x1]
      %vm470 = vsmask.f32 3328
      %vm471 = vsmask.f32 7440
      %vm472 = vmor %vm470, %vm471
      %v474 = vshrl.u32 %v453, 16
      %v476 = vrot.slane %v474, 4
      %v477 = vshll.u32 %v453, 16
      %v479 = vrot.slane %v477, 5
      %v480 = vor.u32 %v476, %v479
      %v481 = vrot.slane %v480, 4
      %v483 = vshll.u32 %v462, 16
      %v485 = vrot.slane %v483, 5
      %v486 = vsel %vm472, %v481, %v485
      %v488 = vshrl.u32 %v454, 16
      %v490 = vrot.slane %v488, 4
      %v491 = vshll.u32 %v454, 16
      %v493 = vrot.slane %v491, 5
      %v494 = vor.u32 %v490, %v493
      %v495 = vrot.slane %v494, 4
      %v497 = vshll.u32 %v463, 16
      %v499 = vrot.slane %v497, 5
      %v500 = vsel %vm472, %v495, %v499
      %v502 = vshrl.u32 %v455, 16
      %v504 = vrot.slane %v502, 4
      %v505 = vshll.u32 %v455, 16
      %v507 = vrot.slane %v505, 5
      %v508 = vor.u32 %v504, %v507
      %v509 = vrot.slane %v508, 4
      %v511 = vshll.u32 %v464, 16
      %v513 = vrot.slane %v511, 5
      %v514 = vsel %vm472, %v509, %v513
      %v516 = vshrl.u32 %v456, 16
      %v518 = vrot.slane %v516, 4
      %v519 = vshll.u32 %v456, 16
      %v521 = vrot.slane %v519, 5
      %v522 = vor.u32 %v518, %v521
      %v523 = vrot.slane %v522, 4
      %v525 = vshll.u32 %v465, 16
      %v527 = vrot.slane %v525, 5
      %v528 = vsel %vm472, %v523, %v527
      %v530 = vshrl.u32 %v457, 16
      %v532 = vrot.slane %v530, 4
      %v533 = vshll.u32 %v457, 16
      %v535 = vrot.slane %v533, 5
      %v536 = vor.u32 %v532, %v535
      %v537 = vrot.slane %v536, 4
      %v539 = vshll.u32 %v466, 16
      %v541 = vrot.slane %v539, 5
      %v542 = vsel %vm472, %v537, %v541
      %v544 = vshrl.u32 %v458, 16
      %v546 = vrot.slane %v544, 4
      %v547 = vshll.u32 %v458, 16
      %v549 = vrot.slane %v547, 5
      %v550 = vor.u32 %v546, %v549
      %v551 = vrot.slane %v550, 4
      %v553 = vshll.u32 %v467, 16
      %v555 = vrot.slane %v553, 5
      %v556 = vsel %vm472, %v551, %v555
      %v558 = vshrl.u32 %v459, 16
      %v560 = vrot.slane %v558, 4
      %v561 = vshll.u32 %v459, 16
      %v563 = vrot.slane %v561, 5
      %v564 = vor.u32 %v560, %v563
      %v565 = vrot.slane %v564, 4
      %v567 = vshll.u32 %v468, 16
      %v569 = vrot.slane %v567, 5
      %v570 = vsel %vm472, %v565, %v569
      %v572 = vshrl.u32 %v460, 16
      %v574 = vrot.slane %v572, 4
      %v575 = vshll.u32 %v460, 16
      %v577 = vrot.slane %v575, 5
      %v578 = vor.u32 %v574, %v577
      %v579 = vrot.slane %v578, 4
      %v581 = vshll.u32 %v469, 16
      %v583 = vrot.slane %v581, 5
      %v584 = vsel %vm472, %v579, %v583
      %s585 = scalar_lea.vmem %s3, 4
      %v586 = vld [vmem:[%s585] sm:$0xf]
      %v587 = vunpack.c.l.b16 %v486
      %v588 = vunpack.c.l.b16 %v500
      %v589 = vunpack.c.l.b16 %v514
      %v590 = vunpack.c.l.b16 %v528
      %v591 = vunpack.c.l.b16 %v542
      %v592 = vunpack.c.l.b16 %v556
      %v593 = vunpack.c.l.b16 %v570
      %v594 = vunpack.c.l.b16 %v584
      %v595 = vpack.c.b16 %v588, %v587
      %v596 = vpack.c.b16 %v590, %v589
      %v597 = vpack.c.b16 %v592, %v591
      %v598 = vpack.c.b16 %v594, %v593
      %vm599 = vcmask 64512
      %v601 = vsel %vm599, %v595, 0
      %v604 = vsel %vm599, %v596, 0
      %v607 = vsel %vm599, %v597, 0
      %v610 = vsel %vm599, %v598, 0
      %vm612 = vcmask 1043456
      %v614 = vsel %vm612, %v586, 0
      %616 = vmatpush.bf16.msra.mxu0 0
      %617 = vmatpush.bf16.msra.mxu0 0
      %618 = vmatpush.bf16.msra.mxu0 0
      %619 = vmatpush.bf16.msra.mxu0 0
      %620 = vmatpush.bf16.msra.mxu0 0
      %621 = vmatpush.bf16.msra.mxu0 0
      %622 = vmatpush.bf16.msra.mxu0 0
      %623 = vmatpush.bf16.msra.mxu0 %v614
      %624 = vmatmul.bf16.gmra.mxu0 %v601
      %v625 = vpop.f32.mrf.mxu0
      %v626 = vadd.f32 0.0, %v625
      %v627 = vpop.f32.mrf.mxu0
      %v628 = vadd.f32 0.0, %v627
      %629 = vmatmul.bf16.gmra.mxu0 %v604
      %v630 = vpop.f32.mrf.mxu0
      %v631 = vadd.f32 0.0, %v630
      %v632 = vpop.f32.mrf.mxu0
      %v633 = vadd.f32 0.0, %v632
      %634 = vmatmul.bf16.gmra.mxu0 %v607
      %v635 = vpop.f32.mrf.mxu0
      %v636 = vadd.f32 0.0, %v635
      %v637 = vpop.f32.mrf.mxu0
      %v638 = vadd.f32 0.0, %v637
      %639 = vmatmul.bf16.gmra.mxu0 %v610
      %v640 = vpop.f32.mrf.mxu0
      %v641 = vadd.f32 0.0, %v640
      %v642 = vpop.f32.mrf.mxu0
      %v643 = vadd.f32 0.0, %v642
      %644 = vdwg.mxu0
      %v653 = vunpack.c.l.b16 %v453
      %v654 = vunpack.c.l.b16 %v454
      %v655 = vunpack.c.l.b16 %v455
      %v656 = vunpack.c.l.b16 %v456
      %v657 = vunpack.c.l.b16 %v457
      %v658 = vunpack.c.l.b16 %v458
      %v659 = vunpack.c.l.b16 %v459
      %v660 = vunpack.c.l.b16 %v460
      %v661 = vpack.c.b16 %v654, %v653
      %v662 = vpack.c.b16 %v656, %v655
      %v663 = vpack.c.b16 %v658, %v657
      %v664 = vpack.c.b16 %v660, %v659
      %v666 = vsel %vm599, %v661, 0
      %v669 = vsel %vm599, %v662, 0
      %v672 = vsel %vm599, %v663, 0
      %v675 = vsel %vm599, %v664, 0
      %v678 = vsel %vm612, %v461, 0
      %680 = vmatpush.bf16.msra.mxu0 0
      %681 = vmatpush.bf16.msra.mxu0 0
      %682 = vmatpush.bf16.msra.mxu0 0
      %683 = vmatpush.bf16.msra.mxu0 0
      %684 = vmatpush.bf16.msra.mxu0 0
      %685 = vmatpush.bf16.msra.mxu0 0
      %686 = vmatpush.bf16.msra.mxu0 0
      %687 = vmatpush.bf16.msra.mxu0 %v678
      %688 = vmatmul.bf16.gmra.mxu0 %v666
      %v689 = vpop.f32.mrf.mxu0
      %v690 = vadd.f32 %v626, %v689
      %v691 = vpop.f32.mrf.mxu0
      %v692 = vadd.f32 %v628, %v691
      %693 = vmatmul.bf16.gmra.mxu0 %v669
      %v694 = vpop.f32.mrf.mxu0
      %v695 = vadd.f32 %v631, %v694
      %v696 = vpop.f32.mrf.mxu0
      %v697 = vadd.f32 %v633, %v696
      %698 = vmatmul.bf16.gmra.mxu0 %v672
      %v699 = vpop.f32.mrf.mxu0
      %v700 = vadd.f32 %v636, %v699
      %v701 = vpop.f32.mrf.mxu0
      %v702 = vadd.f32 %v638, %v701
      %703 = vmatmul.bf16.gmra.mxu0 %v675
      %v704 = vpop.f32.mrf.mxu0
      %v705 = vadd.f32 %v641, %v704
      %v706 = vpop.f32.mrf.mxu0
      %v707 = vadd.f32 %v643, %v706
      %708 = vdwg.mxu0
      %v709 = vld [vmem:[#allocation2] sm:$0xe]
      %v710 = vld [vmem:[#allocation2 + $0x8] sm:$0xe]
      %v711 = vld [vmem:[#allocation2 + $0x10] sm:$0xe]
      %v712 = vld [vmem:[#allocation2 + $0x18] sm:$0xe]
      %v713 = vld [vmem:[#allocation2 + $0x20] sm:$0xe]
      %v714 = vld [vmem:[#allocation2 + $0x28] sm:$0xe]
      %v715 = vld [vmem:[#allocation2 + $0x30] sm:$0xe]
      %v716 = vld [vmem:[#allocation2 + $0x38] sm:$0xe]
      %vm733 = vcmask 1042432
      %vm734 = vcmask 1046532
      %vm735 = vmor %vm733, %vm734
      %v736 = vrot.slane %v709, 5
      %v737 = vrot.slane %v736, 4
      %v738 = vrot.slane %v462, 5
      %v739 = vsel %vm735, %v737, %v738
      %v740 = vrot.slane %v710, 5
      %v741 = vrot.slane %v740, 4
      %v742 = vrot.slane %v463, 5
      %v743 = vsel %vm735, %v741, %v742
      %v744 = vrot.slane %v711, 5
      %v745 = vrot.slane %v744, 4
      %v746 = vrot.slane %v464, 5
      %v747 = vsel %vm735, %v745, %v746
      %v748 = vrot.slane %v712, 5
      %v749 = vrot.slane %v748, 4
      %v750 = vrot.slane %v465, 5
      %v751 = vsel %vm735, %v749, %v750
      %v752 = vrot.slane %v713, 5
      %v753 = vrot.slane %v752, 4
      %v754 = vrot.slane %v466, 5
      %v755 = vsel %vm735, %v753, %v754
      %v756 = vrot.slane %v714, 5
      %v757 = vrot.slane %v756, 4
      %v758 = vrot.slane %v467, 5
      %v759 = vsel %vm735, %v757, %v758
      %v760 = vrot.slane %v715, 5
      %v761 = vrot.slane %v760, 4
      %v762 = vrot.slane %v468, 5
      %v763 = vsel %vm735, %v761, %v762
      %v764 = vrot.slane %v716, 5
      %v765 = vrot.slane %v764, 4
      %v766 = vrot.slane %v469, 5
      %v767 = vsel %vm735, %v765, %v766
      %s768 = scalar_lea.vmem %s3, 8
      %v769 = vld [vmem:[%s768] sm:$0xf]
      %v770 = vunpack.c.l.b16 %v739
      %v771 = vunpack.c.l.b16 %v743
      %v772 = vunpack.c.l.b16 %v747
      %v773 = vunpack.c.l.b16 %v751
      %v774 = vunpack.c.l.b16 %v755
      %v775 = vunpack.c.l.b16 %v759
      %v776 = vunpack.c.l.b16 %v763
      %v777 = vunpack.c.l.b16 %v767
      %v778 = vpack.c.b16 %v771, %v770
      %v779 = vpack.c.b16 %v773, %v772
      %v780 = vpack.c.b16 %v775, %v774
      %v781 = vpack.c.b16 %v777, %v776
      %v783 = vsel %vm599, %v778, 0
      %v786 = vsel %vm599, %v779, 0
      %v789 = vsel %vm599, %v780, 0
      %v792 = vsel %vm599, %v781, 0
      %v795 = vsel %vm612, %v769, 0
      %797 = vmatpush.bf16.msra.mxu0 0
      %798 = vmatpush.bf16.msra.mxu0 0
      %799 = vmatpush.bf16.msra.mxu0 0
      %800 = vmatpush.bf16.msra.mxu0 0
      %801 = vmatpush.bf16.msra.mxu0 0
      %802 = vmatpush.bf16.msra.mxu0 0
      %803 = vmatpush.bf16.msra.mxu0 0
      %804 = vmatpush.bf16.msra.mxu0 %v795
      %805 = vmatmul.bf16.gmra.mxu0 %v783
      %v806 = vpop.f32.mrf.mxu0
      %v807 = vadd.f32 0.0, %v806
      %v808 = vpop.f32.mrf.mxu0
      %v809 = vadd.f32 0.0, %v808
      %810 = vmatmul.bf16.gmra.mxu0 %v786
      %v811 = vpop.f32.mrf.mxu0
      %v812 = vadd.f32 0.0, %v811
      %v813 = vpop.f32.mrf.mxu0
      %v814 = vadd.f32 0.0, %v813
      %815 = vmatmul.bf16.gmra.mxu0 %v789
      %v816 = vpop.f32.mrf.mxu0
      %v817 = vadd.f32 0.0, %v816
      %v818 = vpop.f32.mrf.mxu0
      %v819 = vadd.f32 0.0, %v818
      %820 = vmatmul.bf16.gmra.mxu0 %v792
      %v821 = vpop.f32.mrf.mxu0
      %v822 = vadd.f32 0.0, %v821
      %v823 = vpop.f32.mrf.mxu0
      %v824 = vadd.f32 0.0, %v823
      %825 = vdwg.mxu0
      %v826 = vadd.f32 %v690, %v807
      %v827 = vadd.f32 %v692, %v809
      %v828 = vadd.f32 %v695, %v812
      %v829 = vadd.f32 %v697, %v814
      %v830 = vadd.f32 %v700, %v817
      %v831 = vadd.f32 %v702, %v819
      %v832 = vadd.f32 %v705, %v822
      %v833 = vadd.f32 %v707, %v824
      %v834 = vld [vmem:[%s398] sm:$0xf]
      %v835 = vld [vmem:[%s398 + $0x8] sm:$0xf]
      %v836 = vld [vmem:[%s398 + $0x10] sm:$0xf]
      %v837 = vld [vmem:[%s398 + $0x18] sm:$0xf]
      %v838 = vld [vmem:[%s398 + $0x20] sm:$0xf]
      %v839 = vld [vmem:[%s398 + $0x28] sm:$0xf]
      %v840 = vld [vmem:[%s398 + $0x30] sm:$0xf]
      %v841 = vld [vmem:[%s398 + $0x38] sm:$0xf]
      %s842 = scalar_lea.vmem %s3, 12
      %v843 = vld [vmem:[%s842] sm:$0xf]
      %v852 = vunpack.c.l.b16 %v834
      %v853 = vunpack.c.l.b16 %v835
      %v854 = vunpack.c.l.b16 %v836
      %v855 = vunpack.c.l.b16 %v837
      %v856 = vunpack.c.l.b16 %v838
      %v857 = vunpack.c.l.b16 %v839
      %v858 = vunpack.c.l.b16 %v840
      %v859 = vunpack.c.l.b16 %v841
      %v860 = vpack.c.b16 %v853, %v852
      %v861 = vpack.c.b16 %v855, %v854
      %v862 = vpack.c.b16 %v857, %v856
      %v863 = vpack.c.b16 %v859, %v858
      %v865 = vsel %vm599, %v860, 0
      %v868 = vsel %vm599, %v861, 0
      %v871 = vsel %vm599, %v862, 0
      %v874 = vsel %vm599, %v863, 0
      %v877 = vsel %vm612, %v843, 0
      %879 = vmatpush.bf16.msra.mxu0 0
      %880 = vmatpush.bf16.msra.mxu0 0
      %881 = vmatpush.bf16.msra.mxu0 0
      %882 = vmatpush.bf16.msra.mxu0 0
      %883 = vmatpush.bf16.msra.mxu0 0
      %884 = vmatpush.bf16.msra.mxu0 0
      %885 = vmatpush.bf16.msra.mxu0 0
      %886 = vmatpush.bf16.msra.mxu0 %v877
      %887 = vmatmul.bf16.gmra.mxu0 %v865
      %v888 = vpop.f32.mrf.mxu0
      %v889 = vadd.f32 0.0, %v888
      %v890 = vpop.f32.mrf.mxu0
      %v891 = vadd.f32 0.0, %v890
      %892 = vmatmul.bf16.gmra.mxu0 %v868
      %v893 = vpop.f32.mrf.mxu0
      %v894 = vadd.f32 0.0, %v893
      %v895 = vpop.f32.mrf.mxu0
      %v896 = vadd.f32 0.0, %v895
      %897 = vmatmul.bf16.gmra.mxu0 %v871
      %v898 = vpop.f32.mrf.mxu0
      %v899 = vadd.f32 0.0, %v898
      %v900 = vpop.f32.mrf.mxu0
      %v901 = vadd.f32 0.0, %v900
      %902 = vmatmul.bf16.gmra.mxu0 %v874
      %v903 = vpop.f32.mrf.mxu0
      %v904 = vadd.f32 0.0, %v903
      %v905 = vpop.f32.mrf.mxu0
      %v906 = vadd.f32 0.0, %v905
      %907 = vdwg.mxu0
      %v908 = vadd.f32 %v826, %v889
      %v909 = vadd.f32 %v827, %v891
      %v910 = vadd.f32 %v828, %v894
      %v911 = vadd.f32 %v829, %v896
      %v912 = vadd.f32 %v830, %v899
      %v913 = vadd.f32 %v831, %v901
      %v914 = vadd.f32 %v832, %v904
      %v915 = vadd.f32 %v833, %v906
      %v916 = vld [vmem:[%s398] sm:$0xf]
      %v917 = vld [vmem:[%s398 + $0x4] sm:$0x1]
      %v918 = vld [vmem:[%s398 + $0x8] sm:$0xf]
      %v919 = vld [vmem:[%s398 + $0xc] sm:$0x1]
      %v920 = vld [vmem:[%s398 + $0x10] sm:$0xf]
      %v921 = vld [vmem:[%s398 + $0x14] sm:$0x1]
      %v922 = vld [vmem:[%s398 + $0x18] sm:$0xf]
      %v923 = vld [vmem:[%s398 + $0x1c] sm:$0x1]
      %v924 = vld [vmem:[%s398 + $0x20] sm:$0xf]
      %v925 = vld [vmem:[%s398 + $0x24] sm:$0x1]
      %v926 = vld [vmem:[%s398 + $0x28] sm:$0xf]
      %v927 = vld [vmem:[%s398 + $0x2c] sm:$0x1]
      %v928 = vld [vmem:[%s398 + $0x30] sm:$0xf]
      %v929 = vld [vmem:[%s398 + $0x34] sm:$0x1]
      %v930 = vld [vmem:[%s398 + $0x38] sm:$0xf]
      %v931 = vld [vmem:[%s398 + $0x3c] sm:$0x1]
      %v933 = vshrl.u32 %v916, 16
      %v935 = vrot.slane %v933, 4
      %v936 = vshll.u32 %v916, 16
      %v938 = vrot.slane %v936, 5
      %v939 = vor.u32 %v935, %v938
      %v940 = vrot.slane %v939, 4
      %v942 = vshll.u32 %v917, 16
      %v944 = vrot.slane %v942, 5
      %v945 = vsel %vm472, %v940, %v944
      %v947 = vshrl.u32 %v918, 16
      %v949 = vrot.slane %v947, 4
      %v950 = vshll.u32 %v918, 16
      %v952 = vrot.slane %v950, 5
      %v953 = vor.u32 %v949, %v952
      %v954 = vrot.slane %v953, 4
      %v956 = vshll.u32 %v919, 16
      %v958 = vrot.slane %v956, 5
      %v959 = vsel %vm472, %v954, %v958
      %v961 = vshrl.u32 %v920, 16
      %v963 = vrot.slane %v961, 4
      %v964 = vshll.u32 %v920, 16
      %v966 = vrot.slane %v964, 5
      %v967 = vor.u32 %v963, %v966
      %v968 = vrot.slane %v967, 4
      %v970 = vshll.u32 %v921, 16
      %v972 = vrot.slane %v970, 5
      %v973 = vsel %vm472, %v968, %v972
      %v975 = vshrl.u32 %v922, 16
      %v977 = vrot.slane %v975, 4
      %v978 = vshll.u32 %v922, 16
      %v980 = vrot.slane %v978, 5
      %v981 = vor.u32 %v977, %v980
      %v982 = vrot.slane %v981, 4
      %v984 = vshll.u32 %v923, 16
      %v986 = vrot.slane %v984, 5
      %v987 = vsel %vm472, %v982, %v986
      %v989 = vshrl.u32 %v924, 16
      %v991 = vrot.slane %v989, 4
      %v992 = vshll.u32 %v924, 16
      %v994 = vrot.slane %v992, 5
      %v995 = vor.u32 %v991, %v994
      %v996 = vrot.slane %v995, 4
      %v998 = vshll.u32 %v925, 16
      %v1000 = vrot.slane %v998, 5
      %v1001 = vsel %vm472, %v996, %v1000
      %v1003 = vshrl.u32 %v926, 16
      %v1005 = vrot.slane %v1003, 4
      %v1006 = vshll.u32 %v926, 16
      %v1008 = vrot.slane %v1006, 5
      %v1009 = vor.u32 %v1005, %v1008
      %v1010 = vrot.slane %v1009, 4
      %v1012 = vshll.u32 %v927, 16
      %v1014 = vrot.slane %v1012, 5
      %v1015 = vsel %vm472, %v1010, %v1014
      %v1017 = vshrl.u32 %v928, 16
      %v1019 = vrot.slane %v1017, 4
      %v1020 = vshll.u32 %v928, 16
      %v1022 = vrot.slane %v1020, 5
      %v1023 = vor.u32 %v1019, %v1022
      %v1024 = vrot.slane %v1023, 4
      %v1026 = vshll.u32 %v929, 16
      %v1028 = vrot.slane %v1026, 5
      %v1029 = vsel %vm472, %v1024, %v1028
      %v1031 = vshrl.u32 %v930, 16
      %v1033 = vrot.slane %v1031, 4
      %v1034 = vshll.u32 %v930, 16
      %v1036 = vrot.slane %v1034, 5
      %v1037 = vor.u32 %v1033, %v1036
      %v1038 = vrot.slane %v1037, 4
      %v1040 = vshll.u32 %v931, 16
      %v1042 = vrot.slane %v1040, 5
      %v1043 = vsel %vm472, %v1038, %v1042
      %s1044 = scalar_lea.vmem %s3, 16
      %v1045 = vld [vmem:[%s1044] sm:$0xf]
      %v1046 = vunpack.c.l.b16 %v945
      %v1047 = vunpack.c.l.b16 %v959
      %v1048 = vunpack.c.l.b16 %v973
      %v1049 = vunpack.c.l.b16 %v987
      %v1050 = vunpack.c.l.b16 %v1001
      %v1051 = vunpack.c.l.b16 %v1015
      %v1052 = vunpack.c.l.b16 %v1029
      %v1053 = vunpack.c.l.b16 %v1043
      %v1054 = vpack.c.b16 %v1047, %v1046
      %v1055 = vpack.c.b16 %v1049, %v1048
      %v1056 = vpack.c.b16 %v1051, %v1050
      %v1057 = vpack.c.b16 %v1053, %v1052
      %v1059 = vsel %vm599, %v1054, 0
      %v1062 = vsel %vm599, %v1055, 0
      %v1065 = vsel %vm599, %v1056, 0
      %v1068 = vsel %vm599, %v1057, 0
      %v1071 = vsel %vm612, %v1045, 0
      %1073 = vmatpush.bf16.msra.mxu0 0
      %1074 = vmatpush.bf16.msra.mxu0 0
      %1075 = vmatpush.bf16.msra.mxu0 0
      %1076 = vmatpush.bf16.msra.mxu0 0
      %1077 = vmatpush.bf16.msra.mxu0 0
      %1078 = vmatpush.bf16.msra.mxu0 0
      %1079 = vmatpush.bf16.msra.mxu0 0
      %1080 = vmatpush.bf16.msra.mxu0 %v1071
      %1081 = vmatmul.bf16.gmra.mxu0 %v1059
      %v1082 = vpop.f32.mrf.mxu0
      %v1083 = vadd.f32 0.0, %v1082
      %v1084 = vpop.f32.mrf.mxu0
      %v1085 = vadd.f32 0.0, %v1084
      %1086 = vmatmul.bf16.gmra.mxu0 %v1062
      %v1087 = vpop.f32.mrf.mxu0
      %v1088 = vadd.f32 0.0, %v1087
      %v1089 = vpop.f32.mrf.mxu0
      %v1090 = vadd.f32 0.0, %v1089
      %1091 = vmatmul.bf16.gmra.mxu0 %v1065
      %v1092 = vpop.f32.mrf.mxu0
      %v1093 = vadd.f32 0.0, %v1092
      %v1094 = vpop.f32.mrf.mxu0
      %v1095 = vadd.f32 0.0, %v1094
      %1096 = vmatmul.bf16.gmra.mxu0 %v1068
      %v1097 = vpop.f32.mrf.mxu0
      %v1098 = vadd.f32 0.0, %v1097
      %v1099 = vpop.f32.mrf.mxu0
      %v1100 = vadd.f32 0.0, %v1099
      %1101 = vdwg.mxu0
      %v1102 = vadd.f32 %v908, %v1083
      %v1103 = vadd.f32 %v909, %v1085
      %v1104 = vadd.f32 %v910, %v1088
      %v1105 = vadd.f32 %v911, %v1090
      %v1106 = vadd.f32 %v912, %v1093
      %v1107 = vadd.f32 %v913, %v1095
      %v1108 = vadd.f32 %v914, %v1098
      %v1109 = vadd.f32 %v915, %v1100
      %v1110 = vld [vmem:[%s398] sm:$0xe]
      %v1111 = vld [vmem:[%s398 + $0x8] sm:$0xe]
      %v1112 = vld [vmem:[%s398 + $0x10] sm:$0xe]
      %v1113 = vld [vmem:[%s398 + $0x18] sm:$0xe]
      %v1114 = vld [vmem:[%s398 + $0x20] sm:$0xe]
      %v1115 = vld [vmem:[%s398 + $0x28] sm:$0xe]
      %v1116 = vld [vmem:[%s398 + $0x30] sm:$0xe]
      %v1117 = vld [vmem:[%s398 + $0x38] sm:$0xe]
      %v1134 = vrot.slane %v1110, 5
      %v1135 = vrot.slane %v1134, 4
      %v1136 = vrot.slane %v917, 5
      %v1137 = vsel %vm735, %v1135, %v1136
      %v1138 = vrot.slane %v1111, 5
      %v1139 = vrot.slane %v1138, 4
      %v1140 = vrot.slane %v919, 5
      %v1141 = vsel %vm735, %v1139, %v1140
      %v1142 = vrot.slane %v1112, 5
      %v1143 = vrot.slane %v1142, 4
      %v1144 = vrot.slane %v921, 5
      %v1145 = vsel %vm735, %v1143, %v1144
      %v1146 = vrot.slane %v1113, 5
      %v1147 = vrot.slane %v1146, 4
      %v1148 = vrot.slane %v923, 5
      %v1149 = vsel %vm735, %v1147, %v1148
      %v1150 = vrot.slane %v1114, 5
      %v1151 = vrot.slane %v1150, 4
      %v1152 = vrot.slane %v925, 5
      %v1153 = vsel %vm735, %v1151, %v1152
      %v1154 = vrot.slane %v1115, 5
      %v1155 = vrot.slane %v1154, 4
      %v1156 = vrot.slane %v927, 5
      %v1157 = vsel %vm735, %v1155, %v1156
      %v1158 = vrot.slane %v1116, 5
      %v1159 = vrot.slane %v1158, 4
      %v1160 = vrot.slane %v929, 5
      %v1161 = vsel %vm735, %v1159, %v1160
      %v1162 = vrot.slane %v1117, 5
      %v1163 = vrot.slane %v1162, 4
      %v1164 = vrot.slane %v931, 5
      %v1165 = vsel %vm735, %v1163, %v1164
      %s1166 = scalar_lea.vmem %s3, 20
      %v1167 = vld [vmem:[%s1166] sm:$0xf]
      %v1168 = vunpack.c.l.b16 %v1137
      %v1169 = vunpack.c.l.b16 %v1141
      %v1170 = vunpack.c.l.b16 %v1145
      %v1171 = vunpack.c.l.b16 %v1149
      %v1172 = vunpack.c.l.b16 %v1153
      %v1173 = vunpack.c.l.b16 %v1157
      %v1174 = vunpack.c.l.b16 %v1161
      %v1175 = vunpack.c.l.b16 %v1165
      %v1176 = vpack.c.b16 %v1169, %v1168
      %v1177 = vpack.c.b16 %v1171, %v1170
      %v1178 = vpack.c.b16 %v1173, %v1172
      %v1179 = vpack.c.b16 %v1175, %v1174
      %v1181 = vsel %vm599, %v1176, 0
      %v1184 = vsel %vm599, %v1177, 0
      %v1187 = vsel %vm599, %v1178, 0
      %v1190 = vsel %vm599, %v1179, 0
      %v1193 = vsel %vm612, %v1167, 0
      %1195 = vmatpush.bf16.msra.mxu0 0
      %1196 = vmatpush.bf16.msra.mxu0 0
      %1197 = vmatpush.bf16.msra.mxu0 0
      %1198 = vmatpush.bf16.msra.mxu0 0
      %1199 = vmatpush.bf16.msra.mxu0 0
      %1200 = vmatpush.bf16.msra.mxu0 0
      %1201 = vmatpush.bf16.msra.mxu0 0
      %1202 = vmatpush.bf16.msra.mxu0 %v1193
      %1203 = vmatmul.bf16.gmra.mxu0 %v1181
      %v1204 = vpop.f32.mrf.mxu0
      %v1205 = vadd.f32 0.0, %v1204
      %v1206 = vpop.f32.mrf.mxu0
      %v1207 = vadd.f32 0.0, %v1206
      %1208 = vmatmul.bf16.gmra.mxu0 %v1184
      %v1209 = vpop.f32.mrf.mxu0
      %v1210 = vadd.f32 0.0, %v1209
      %v1211 = vpop.f32.mrf.mxu0
      %v1212 = vadd.f32 0.0, %v1211
      %1213 = vmatmul.bf16.gmra.mxu0 %v1187
      %v1214 = vpop.f32.mrf.mxu0
      %v1215 = vadd.f32 0.0, %v1214
      %v1216 = vpop.f32.mrf.mxu0
      %v1217 = vadd.f32 0.0, %v1216
      %1218 = vmatmul.bf16.gmra.mxu0 %v1190
      %v1219 = vpop.f32.mrf.mxu0
      %v1220 = vadd.f32 0.0, %v1219
      %v1221 = vpop.f32.mrf.mxu0
      %v1222 = vadd.f32 0.0, %v1221
      %1223 = vdwg.mxu0
      %v1224 = vadd.f32 %v1102, %v1205
      %v1225 = vadd.f32 %v1103, %v1207
      %v1226 = vadd.f32 %v1104, %v1210
      %v1227 = vadd.f32 %v1105, %v1212
      %v1228 = vadd.f32 %v1106, %v1215
      %v1229 = vadd.f32 %v1107, %v1217
      %v1230 = vadd.f32 %v1108, %v1220
      %v1231 = vadd.f32 %v1109, %v1222
      %s1232 = scalar_lea.vmem [#allocation2], 16
      %v1233 = vld [vmem:[%s1232] sm:$0xf]
      %v1234 = vld [vmem:[%s1232 + $0x8] sm:$0xf]
      %v1235 = vld [vmem:[%s1232 + $0x10] sm:$0xf]
      %v1236 = vld [vmem:[%s1232 + $0x18] sm:$0xf]
      %v1237 = vld [vmem:[%s1232 + $0x20] sm:$0xf]
      %v1238 = vld [vmem:[%s1232 + $0x28] sm:$0xf]
      %v1239 = vld [vmem:[%s1232 + $0x30] sm:$0xf]
      %v1240 = vld [vmem:[%s1232 + $0x38] sm:$0xf]
      %s1241 = scalar_lea.vmem %s3, 24
      %v1242 = vld [vmem:[%s1241] sm:$0xf]
      %v1251 = vunpack.c.l.b16 %v1233
      %v1252 = vunpack.c.l.b16 %v1234
      %v1253 = vunpack.c.l.b16 %v1235
      %v1254 = vunpack.c.l.b16 %v1236
      %v1255 = vunpack.c.l.b16 %v1237
      %v1256 = vunpack.c.l.b16 %v1238
      %v1257 = vunpack.c.l.b16 %v1239
      %v1258 = vunpack.c.l.b16 %v1240
      %v1259 = vpack.c.b16 %v1252, %v1251
      %v1260 = vpack.c.b16 %v1254, %v1253
      %v1261 = vpack.c.b16 %v1256, %v1255
      %v1262 = vpack.c.b16 %v1258, %v1257
      %v1264 = vsel %vm599, %v1259, 0
      %v1267 = vsel %vm599, %v1260, 0
      %v1270 = vsel %vm599, %v1261, 0
      %v1273 = vsel %vm599, %v1262, 0
      %v1276 = vsel %vm612, %v1242, 0
      %1278 = vmatpush.bf16.msra.mxu0 0
      %1279 = vmatpush.bf16.msra.mxu0 0
      %1280 = vmatpush.bf16.msra.mxu0 0
      %1281 = vmatpush.bf16.msra.mxu0 0
      %1282 = vmatpush.bf16.msra.mxu0 0
      %1283 = vmatpush.bf16.msra.mxu0 0
      %1284 = vmatpush.bf16.msra.mxu0 0
      %1285 = vmatpush.bf16.msra.mxu0 %v1276
      %1286 = vmatmul.bf16.gmra.mxu0 %v1264
      %v1287 = vpop.f32.mrf.mxu0
      %v1288 = vadd.f32 0.0, %v1287
      %v1289 = vpop.f32.mrf.mxu0
      %v1290 = vadd.f32 0.0, %v1289
      %1291 = vmatmul.bf16.gmra.mxu0 %v1267
      %v1292 = vpop.f32.mrf.mxu0
      %v1293 = vadd.f32 0.0, %v1292
      %v1294 = vpop.f32.mrf.mxu0
      %v1295 = vadd.f32 0.0, %v1294
      %1296 = vmatmul.bf16.gmra.mxu0 %v1270
      %v1297 = vpop.f32.mrf.mxu0
      %v1298 = vadd.f32 0.0, %v1297
      %v1299 = vpop.f32.mrf.mxu0
      %v1300 = vadd.f32 0.0, %v1299
      %1301 = vmatmul.bf16.gmra.mxu0 %v1273
      %v1302 = vpop.f32.mrf.mxu0
      %v1303 = vadd.f32 0.0, %v1302
      %v1304 = vpop.f32.mrf.mxu0
      %v1305 = vadd.f32 0.0, %v1304
      %1306 = vdwg.mxu0
      %v1307 = vadd.f32 %v1224, %v1288
      %v1308 = vadd.f32 %v1225, %v1290
      %v1309 = vadd.f32 %v1226, %v1293
      %v1310 = vadd.f32 %v1227, %v1295
      %v1311 = vadd.f32 %v1228, %v1298
      %v1312 = vadd.f32 %v1229, %v1300
      %v1313 = vadd.f32 %v1230, %v1303
      %v1314 = vadd.f32 %v1231, %v1305
      %v1315 = vld [vmem:[%s1232] sm:$0xf]
      %v1316 = vld [vmem:[%s1232 + $0x4] sm:$0x1]
      %v1317 = vld [vmem:[%s1232 + $0x8] sm:$0xf]
      %v1318 = vld [vmem:[%s1232 + $0xc] sm:$0x1]
      %v1319 = vld [vmem:[%s1232 + $0x10] sm:$0xf]
      %v1320 = vld [vmem:[%s1232 + $0x14] sm:$0x1]
      %v1321 = vld [vmem:[%s1232 + $0x18] sm:$0xf]
      %v1322 = vld [vmem:[%s1232 + $0x1c] sm:$0x1]
      %v1323 = vld [vmem:[%s1232 + $0x20] sm:$0xf]
      %v1324 = vld [vmem:[%s1232 + $0x24] sm:$0x1]
      %v1325 = vld [vmem:[%s1232 + $0x28] sm:$0xf]
      %v1326 = vld [vmem:[%s1232 + $0x2c] sm:$0x1]
      %v1327 = vld [vmem:[%s1232 + $0x30] sm:$0xf]
      %v1328 = vld [vmem:[%s1232 + $0x34] sm:$0x1]
      %v1329 = vld [vmem:[%s1232 + $0x38] sm:$0xf]
      %v1330 = vld [vmem:[%s1232 + $0x3c] sm:$0x1]
      %v1332 = vshrl.u32 %v1315, 16
      %v1334 = vrot.slane %v1332, 4
      %v1335 = vshll.u32 %v1315, 16
      %v1337 = vrot.slane %v1335, 5
      %v1338 = vor.u32 %v1334, %v1337
      %v1339 = vrot.slane %v1338, 4
      %v1341 = vshll.u32 %v1316, 16
      %v1343 = vrot.slane %v1341, 5
      %v1344 = vsel %vm472, %v1339, %v1343
      %v1346 = vshrl.u32 %v1317, 16
      %v1348 = vrot.slane %v1346, 4
      %v1349 = vshll.u32 %v1317, 16
      %v1351 = vrot.slane %v1349, 5
      %v1352 = vor.u32 %v1348, %v1351
      %v1353 = vrot.slane %v1352, 4
      %v1355 = vshll.u32 %v1318, 16
      %v1357 = vrot.slane %v1355, 5
      %v1358 = vsel %vm472, %v1353, %v1357
      %v1360 = vshrl.u32 %v1319, 16
      %v1362 = vrot.slane %v1360, 4
      %v1363 = vshll.u32 %v1319, 16
      %v1365 = vrot.slane %v1363, 5
      %v1366 = vor.u32 %v1362, %v1365
      %v1367 = vrot.slane %v1366, 4
      %v1369 = vshll.u32 %v1320, 16
      %v1371 = vrot.slane %v1369, 5
      %v1372 = vsel %vm472, %v1367, %v1371
      %v1374 = vshrl.u32 %v1321, 16
      %v1376 = vrot.slane %v1374, 4
      %v1377 = vshll.u32 %v1321, 16
      %v1379 = vrot.slane %v1377, 5
      %v1380 = vor.u32 %v1376, %v1379
      %v1381 = vrot.slane %v1380, 4
      %v1383 = vshll.u32 %v1322, 16
      %v1385 = vrot.slane %v1383, 5
      %v1386 = vsel %vm472, %v1381, %v1385
      %v1388 = vshrl.u32 %v1323, 16
      %v1390 = vrot.slane %v1388, 4
      %v1391 = vshll.u32 %v1323, 16
      %v1393 = vrot.slane %v1391, 5
      %v1394 = vor.u32 %v1390, %v1393
      %v1395 = vrot.slane %v1394, 4
      %v1397 = vshll.u32 %v1324, 16
      %v1399 = vrot.slane %v1397, 5
      %v1400 = vsel %vm472, %v1395, %v1399
      %v1402 = vshrl.u32 %v1325, 16
      %v1404 = vrot.slane %v1402, 4
      %v1405 = vshll.u32 %v1325, 16
      %v1407 = vrot.slane %v1405, 5
      %v1408 = vor.u32 %v1404, %v1407
      %v1409 = vrot.slane %v1408, 4
      %v1411 = vshll.u32 %v1326, 16
      %v1413 = vrot.slane %v1411, 5
      %v1414 = vsel %vm472, %v1409, %v1413
      %v1416 = vshrl.u32 %v1327, 16
      %v1418 = vrot.slane %v1416, 4
      %v1419 = vshll.u32 %v1327, 16
      %v1421 = vrot.slane %v1419, 5
      %v1422 = vor.u32 %v1418, %v1421
      %v1423 = vrot.slane %v1422, 4
      %v1425 = vshll.u32 %v1328, 16
      %v1427 = vrot.slane %v1425, 5
      %v1428 = vsel %vm472, %v1423, %v1427
      %v1430 = vshrl.u32 %v1329, 16
      %v1432 = vrot.slane %v1430, 4
      %v1433 = vshll.u32 %v1329, 16
      %v1435 = vrot.slane %v1433, 5
      %v1436 = vor.u32 %v1432, %v1435
      %v1437 = vrot.slane %v1436, 4
      %v1439 = vshll.u32 %v1330, 16
      %v1441 = vrot.slane %v1439, 5
      %v1442 = vsel %vm472, %v1437, %v1441
      %s1443 = scalar_lea.vmem %s3, 28
      %v1444 = vld [vmem:[%s1443] sm:$0xf]
      %v1445 = vunpack.c.l.b16 %v1344
      %v1446 = vunpack.c.l.b16 %v1358
      %v1447 = vunpack.c.l.b16 %v1372
      %v1448 = vunpack.c.l.b16 %v1386
      %v1449 = vunpack.c.l.b16 %v1400
      %v1450 = vunpack.c.l.b16 %v1414
      %v1451 = vunpack.c.l.b16 %v1428
      %v1452 = vunpack.c.l.b16 %v1442
      %v1453 = vpack.c.b16 %v1446, %v1445
      %v1454 = vpack.c.b16 %v1448, %v1447
      %v1455 = vpack.c.b16 %v1450, %v1449
      %v1456 = vpack.c.b16 %v1452, %v1451
      %v1458 = vsel %vm599, %v1453, 0
      %v1461 = vsel %vm599, %v1454, 0
      %v1464 = vsel %vm599, %v1455, 0
      %v1467 = vsel %vm599, %v1456, 0
      %v1470 = vsel %vm612, %v1444, 0
      %1472 = vmatpush.bf16.msra.mxu0 0
      %1473 = vmatpush.bf16.msra.mxu0 0
      %1474 = vmatpush.bf16.msra.mxu0 0
      %1475 = vmatpush.bf16.msra.mxu0 0
      %1476 = vmatpush.bf16.msra.mxu0 0
      %1477 = vmatpush.bf16.msra.mxu0 0
      %1478 = vmatpush.bf16.msra.mxu0 0
      %1479 = vmatpush.bf16.msra.mxu0 %v1470
      %1480 = vmatmul.bf16.gmra.mxu0 %v1458
      %v1481 = vpop.f32.mrf.mxu0
      %v1482 = vadd.f32 0.0, %v1481
      %v1483 = vpop.f32.mrf.mxu0
      %v1484 = vadd.f32 0.0, %v1483
      %1485 = vmatmul.bf16.gmra.mxu0 %v1461
      %v1486 = vpop.f32.mrf.mxu0
      %v1487 = vadd.f32 0.0, %v1486
      %v1488 = vpop.f32.mrf.mxu0
      %v1489 = vadd.f32 0.0, %v1488
      %1490 = vmatmul.bf16.gmra.mxu0 %v1464
      %v1491 = vpop.f32.mrf.mxu0
      %v1492 = vadd.f32 0.0, %v1491
      %v1493 = vpop.f32.mrf.mxu0
      %v1494 = vadd.f32 0.0, %v1493
      %1495 = vmatmul.bf16.gmra.mxu0 %v1467
      %v1496 = vpop.f32.mrf.mxu0
      %v1497 = vadd.f32 0.0, %v1496
      %v1498 = vpop.f32.mrf.mxu0
      %v1499 = vadd.f32 0.0, %v1498
      %1500 = vdwg.mxu0
      %v1501 = vadd.f32 %v1307, %v1482
      %v1502 = vadd.f32 %v1308, %v1484
      %v1503 = vadd.f32 %v1309, %v1487
      %v1504 = vadd.f32 %v1310, %v1489
      %v1505 = vadd.f32 %v1311, %v1492
      %v1506 = vadd.f32 %v1312, %v1494
      %v1507 = vadd.f32 %v1313, %v1497
      %v1508 = vadd.f32 %v1314, %v1499
      %v1509 = vld [vmem:[%s1232] sm:$0xe]
      %v1510 = vld [vmem:[%s1232 + $0x8] sm:$0xe]
      %v1511 = vld [vmem:[%s1232 + $0x10] sm:$0xe]
      %v1512 = vld [vmem:[%s1232 + $0x18] sm:$0xe]
      %v1513 = vld [vmem:[%s1232 + $0x20] sm:$0xe]
      %v1514 = vld [vmem:[%s1232 + $0x28] sm:$0xe]
      %v1515 = vld [vmem:[%s1232 + $0x30] sm:$0xe]
      %v1516 = vld [vmem:[%s1232 + $0x38] sm:$0xe]
      %v1533 = vrot.slane %v1509, 5
      %v1534 = vrot.slane %v1533, 4
      %v1535 = vrot.slane %v1316, 5
      %v1536 = vsel %vm735, %v1534, %v1535
      %v1537 = vrot.slane %v1510, 5
      %v1538 = vrot.slane %v1537, 4
      %v1539 = vrot.slane %v1318, 5
      %v1540 = vsel %vm735, %v1538, %v1539
      %v1541 = vrot.slane %v1511, 5
      %v1542 = vrot.slane %v1541, 4
      %v1543 = vrot.slane %v1320, 5
      %v1544 = vsel %vm735, %v1542, %v1543
      %v1545 = vrot.slane %v1512, 5
      %v1546 = vrot.slane %v1545, 4
      %v1547 = vrot.slane %v1322, 5
      %v1548 = vsel %vm735, %v1546, %v1547
      %v1549 = vrot.slane %v1513, 5
      %v1550 = vrot.slane %v1549, 4
      %v1551 = vrot.slane %v1324, 5
      %v1552 = vsel %vm735, %v1550, %v1551
      %v1553 = vrot.slane %v1514, 5
      %v1554 = vrot.slane %v1553, 4
      %v1555 = vrot.slane %v1326, 5
      %v1556 = vsel %vm735, %v1554, %v1555
      %v1557 = vrot.slane %v1515, 5
      %v1558 = vrot.slane %v1557, 4
      %v1559 = vrot.slane %v1328, 5
      %v1560 = vsel %vm735, %v1558, %v1559
      %v1561 = vrot.slane %v1516, 5
      %v1562 = vrot.slane %v1561, 4
      %v1563 = vrot.slane %v1330, 5
      %v1564 = vsel %vm735, %v1562, %v1563
      %s1565 = scalar_lea.vmem %s3, 32
      %v1566 = vld [vmem:[%s1565] sm:$0xf]
      %v1567 = vunpack.c.l.b16 %v1536
      %v1568 = vunpack.c.l.b16 %v1540
      %v1569 = vunpack.c.l.b16 %v1544
      %v1570 = vunpack.c.l.b16 %v1548
      %v1571 = vunpack.c.l.b16 %v1552
      %v1572 = vunpack.c.l.b16 %v1556
      %v1573 = vunpack.c.l.b16 %v1560
      %v1574 = vunpack.c.l.b16 %v1564
      %v1575 = vpack.c.b16 %v1568, %v1567
      %v1576 = vpack.c.b16 %v1570, %v1569
      %v1577 = vpack.c.b16 %v1572, %v1571
      %v1578 = vpack.c.b16 %v1574, %v1573
      %v1580 = vsel %vm599, %v1575, 0
      %v1583 = vsel %vm599, %v1576, 0
      %v1586 = vsel %vm599, %v1577, 0
      %v1589 = vsel %vm599, %v1578, 0
      %v1592 = vsel %vm612, %v1566, 0
      %1594 = vmatpush.bf16.msra.mxu0 0
      %1595 = vmatpush.bf16.msra.mxu0 0
      %1596 = vmatpush.bf16.msra.mxu0 0
      %1597 = vmatpush.bf16.msra.mxu0 0
      %1598 = vmatpush.bf16.msra.mxu0 0
      %1599 = vmatpush.bf16.msra.mxu0 0
      %1600 = vmatpush.bf16.msra.mxu0 0
      %1601 = vmatpush.bf16.msra.mxu0 %v1592
      %1602 = vmatmul.bf16.gmra.mxu0 %v1580
      %v1603 = vpop.f32.mrf.mxu0
      %v1604 = vadd.f32 0.0, %v1603
      %v1605 = vpop.f32.mrf.mxu0
      %v1606 = vadd.f32 0.0, %v1605
      %1607 = vmatmul.bf16.gmra.mxu0 %v1583
      %v1608 = vpop.f32.mrf.mxu0
      %v1609 = vadd.f32 0.0, %v1608
      %v1610 = vpop.f32.mrf.mxu0
      %v1611 = vadd.f32 0.0, %v1610
      %1612 = vmatmul.bf16.gmra.mxu0 %v1586
      %v1613 = vpop.f32.mrf.mxu0
      %v1614 = vadd.f32 0.0, %v1613
      %v1615 = vpop.f32.mrf.mxu0
      %v1616 = vadd.f32 0.0, %v1615
      %1617 = vmatmul.bf16.gmra.mxu0 %v1589
      %v1618 = vpop.f32.mrf.mxu0
      %v1619 = vadd.f32 0.0, %v1618
      %v1620 = vpop.f32.mrf.mxu0
      %v1621 = vadd.f32 0.0, %v1620
      %1622 = vdwg.mxu0
      %v1623 = vadd.f32 %v1501, %v1604
      %v1624 = vadd.f32 %v1502, %v1606
      %v1625 = vadd.f32 %v1503, %v1609
      %v1626 = vadd.f32 %v1504, %v1611
      %v1627 = vadd.f32 %v1505, %v1614
      %v1628 = vadd.f32 %v1506, %v1616
      %v1629 = vadd.f32 %v1507, %v1619
      %v1630 = vadd.f32 %v1508, %v1621
      %v1631 = vpack.c.bf16 %v1623, %v1623
      %v1632 = vpack.c.bf16 %v1624, %v1624
      %v1633 = vpack.c.bf16 %v1625, %v1625
      %v1634 = vpack.c.bf16 %v1626, %v1626
      %v1635 = vpack.c.bf16 %v1627, %v1627
      %v1636 = vpack.c.bf16 %v1628, %v1628
      %v1637 = vpack.c.bf16 %v1629, %v1629
      %v1638 = vpack.c.bf16 %v1630, %v1630
      %1639 = vst.msk [vmem:[%s233] sm:$0xf] %vm240, %v1631
      %1640 = vst.msk [vmem:[%s233 + $0x4] sm:$0xf] %vm240, %v1632
      %1641 = vst.msk [vmem:[%s233 + $0x8] sm:$0xf] %vm240, %v1633
      %1642 = vst.msk [vmem:[%s233 + $0xc] sm:$0xf] %vm240, %v1634
      %1643 = vst.msk [vmem:[%s233 + $0x10] sm:$0xf] %vm240, %v1635
      %1644 = vst.msk [vmem:[%s233 + $0x14] sm:$0xf] %vm240, %v1636
      %1645 = vst.msk [vmem:[%s233 + $0x18] sm:$0xf] %vm240, %v1637
      %1646 = vst.msk [vmem:[%s233 + $0x1c] sm:$0xf] %vm240, %v1638
      %v1647 = vsel %vm599, %v1623, 0.0
      %v1648 = vsel %vm599, %v1624, 0.0
      %v1649 = vadd.f32 %v1647, %v1648
      %v1650 = vsel %vm599, %v1625, 0.0
      %v1651 = vadd.f32 %v1649, %v1650
      %v1652 = vsel %vm599, %v1626, 0.0
      %v1653 = vadd.f32 %v1651, %v1652
      %v1654 = vsel %vm599, %v1627, 0.0
      %v1655 = vadd.f32 %v1653, %v1654
      %v1656 = vsel %vm599, %v1628, 0.0
      %v1657 = vadd.f32 %v1655, %v1656
      %v1658 = vsel %vm599, %v1629, 0.0
      %v1659 = vadd.f32 %v1657, %v1658
      %v1660 = vsel %vm599, %v1630, 0.0
      %v1661 = vadd.f32 %v1659, %v1660
      %v1662 = vrot.slane %v1661, 4
      %v1663 = vadd.f32 %v1661, %v1662
      %v1664 = vrot.slane %v1663, 2
      %v1665 = vadd.f32 %v1663, %v1664
      %v1666 = vrot.slane %v1665, 1
      %v1667 = vadd.f32 %v1665, %v1666
      %v1668 = vmul.f32 %v1623, %v1623
      %v1669 = vmul.f32 %v1624, %v1624
      %v1670 = vmul.f32 %v1625, %v1625
      %v1671 = vmul.f32 %v1626, %v1626
      %v1672 = vmul.f32 %v1627, %v1627
      %v1673 = vmul.f32 %v1628, %v1628
      %v1674 = vmul.f32 %v1629, %v1629
      %v1675 = vmul.f32 %v1630, %v1630
      %v1676 = vsel %vm599, %v1668, 0.0
      %v1677 = vsel %vm599, %v1669, 0.0
      %v1678 = vadd.f32 %v1676, %v1677
      %v1679 = vsel %vm599, %v1670, 0.0
      %v1680 = vadd.f32 %v1678, %v1679
      %v1681 = vsel %vm599, %v1671, 0.0
      %v1682 = vadd.f32 %v1680, %v1681
      %v1683 = vsel %vm599, %v1672, 0.0
      %v1684 = vadd.f32 %v1682, %v1683
      %v1685 = vsel %vm599, %v1673, 0.0
      %v1686 = vadd.f32 %v1684, %v1685
      %v1687 = vsel %vm599, %v1674, 0.0
      %v1688 = vadd.f32 %v1686, %v1687
      %v1689 = vsel %vm599, %v1675, 0.0
      %v1690 = vadd.f32 %v1688, %v1689
      %v1691 = vrot.slane %v1690, 4
      %v1692 = vadd.f32 %v1690, %v1691
      %v1693 = vrot.slane %v1692, 2
      %v1694 = vadd.f32 %v1692, %v1693
      %v1695 = vrot.slane %v1694, 1
      %v1696 = vadd.f32 %v1694, %v1695
      %vm1697 = vcmask 1040384
      %v1698 = vsel %vm1697, %v1667, %v1696
      %vm1699 = vcmask 58368
      %1700 = vst.msk [vmem:[%s238] sm:$0x3] %vm1699, %v1698
      %s1701 = smul.u32 8, %s17
      %p1702 = scmp.lt.s32.totalorder %s1701, 15
      %s1703 = scalar_select %p1702, %s1701, 15
      %s1704 = smul.addr %s1703, 4
      %s1705 = scalar_lea.vmem %s4, %s1704
      %p1706 = scmp.lt.s32.totalorder %s17, 1
      %s1707 = scalar_select %p1706, %s17, 1
      %s1708 = smul.addr %s1707, 2
      %s1709 = scalar_lea.vmem %s5, %s1708
      // Predicated region
      $region37: #{_lambda_.5} parent=35 // pred_check
        %p1710 = pneg %p124
      $region38: #{_lambda_.5} parent=35 // pred_check_branch
        %1712 = sbr.rel (%p1710) target = $region40
      $region39: #{_lambda_.5} parent=35 // pred_region
        %s1713 = smul.u32 8, %s17
      $region40: #{_lambda_.5} parent=35 // pred_fallthru
        _
      // Predicated region
      $region41: #{_lambda_.5} parent=35 // pred_check
        %p1714 = pneg %p150
      $region42: #{_lambda_.5} parent=35 // pred_check_branch
        %1716 = sbr.rel (%p1714) target = $region44
      $region43: #{_lambda_.5} parent=35 // pred_region
        _
      $region44: #{_lambda_.5} parent=35 // pred_fallthru
        _
    $region36: #{_lambda_.5} parent=5 // pred_fallthru
      _
    %p1717 = scmp.le.s32.totalorder 2, %s12
    // Predicated region
    $region45: #{_lambda_.5} parent=5 // pred_check
      %p1718 = pneg %p1717
    $region46: #{_lambda_.5} parent=5 // pred_check_branch
      %1720 = sbr.rel (%p1718) target = $region48
    $region47: #{_lambda_.5} parent=5 // pred_region
      %s1721 = ssub.s32 %s12, 2
      // Predicated region
      $region49: #{_lambda_.5} parent=47 // pred_check
        %p1722 = pneg %p130
      $region50: #{_lambda_.5} parent=47 // pred_check_branch
        %1724 = sbr.rel (%p1722) target = $region52
      $region51: #{_lambda_.5} parent=47 // pred_region
        %s1725 = smul.u32 8, %s18
        %p1726 = scmp.lt.s32.totalorder %s1725, 15
        %s1727 = scalar_select %p1726, %s1725, 15
        %s1728 = smul.addr %s1727, 4
        %s1729 = scalar_lea.vmem %s4, %s1728
      $region52: #{_lambda_.5} parent=47 // pred_fallthru
        _
      // Predicated region
      $region53: #{_lambda_.5} parent=47 // pred_check
        %p1730 = pneg %p156
      $region54: #{_lambda_.5} parent=47 // pred_check_branch
        %1732 = sbr.rel (%p1730) target = $region56
      $region55: #{_lambda_.5} parent=47 // pred_region
        %p1733 = scmp.lt.s32.totalorder %s18, 1
        %s1734 = scalar_select %p1733, %s18, 1
        %s1735 = smul.addr %s1734, 2
        %s1736 = scalar_lea.vmem %s5, %s1735
      $region56: #{_lambda_.5} parent=47 // pred_fallthru
        _
    $region48: #{_lambda_.5} parent=5 // pred_fallthru
      _
  $region6: #{_lambda_.5} parent=0 // loop_footer
    %s16 = sadd.s32 1, %s12
  $region7: #{_lambda_.5} parent=0 // loop_footer_branch
    %11 = sbr.rel target = $region3
  $region8: #{_lambda_.5} parent=0 // loop_exit
    _

</llo_original>
